<compile_context>
chip_gen: v5e
topology: v5e:2x2
jax: 0.10.0
libtpu: 0.0.40
codegen_flags: <defaults>
</compile_context>

<pallas_src>
import functools

import jax
import jax.numpy as jnp
from jax.experimental import pallas as pl
from jax.experimental.pallas import tpu as pltpu

# ---- model hyper-params (small, consistent with the module: input_size == d_k) ----
INPUT_SIZE = 32          # = d_k = d_v  (forward requires features dim == input_size)
D_K = 32
D_V = 32
N_HEADS = 4
SEQ = 8                  # bay_width * bay_height
BATCH = 4                # independent boards / sequences (each == module's batch-1 call)
LN_EPS = 1e-5
ATTN_EPS = 1e-6
MASK_FILL = float(-2 ** 32 + 1)   # note: rounds to -2**32 in f32; masked logits
                                  # underflow to 0 after max-subtract either way.


def _trm_kernel(feat_ref, wqkv_ref, wo_ref,
                l1wt_ref, l1b_ref, l2wt_ref, l2b_ref,
                ln_g_ref, ln_b_ref, out_ref, *, batch, seq):
    """Whole encoder block for all B sequences at once; everything VMEM-resident."""
    x = feat_ref[...]                                   # (B*N, D) f32
    x16 = x.astype(jnp.bfloat16)
    hd = N_HEADS * D_K

    # Fused Q/K/V projection: one bf16 MXU matmul, f32 accumulation.
    # (temperature 1/(sqrt(d_k)+eps) was folded into the Q columns at pack time)
    qkv = jnp.dot(x16, wqkv_ref[...], preferred_element_type=jnp.float32)  # (B*N, 3*H*dk)
    qkv16 = qkv.astype(jnp.bfloat16)

    def split_heads(block2d, dim):
        # (B*N, H*dim) -> (H*B, N, dim); 32-lane slices + free leading-dim reshapes
        # + one leading-axis concat (no 4-D transposes).
        return jnp.concatenate(
            [block2d[:, h * dim:(h + 1) * dim].reshape(batch, seq, dim)
             for h in range(N_HEADS)], axis=0)

    q = split_heads(qkv16[:, 0 * hd:1 * hd], D_K)       # (H*B, N, d_k) bf16
    k = split_heads(qkv16[:, 1 * hd:2 * hd], D_K)       # (H*B, N, d_k) bf16
    v = split_heads(qkv16[:, 2 * hd:3 * hd], D_V)       # (H*B, N, d_v) bf16

    # Strictly-upper-triangular mask (triu, diagonal=1), identical for every (head,
    # batch) pair; the pad mask of the reference forward is all-False and omitted.
    row = jax.lax.broadcasted_iota(jnp.int32, (seq, seq), 0)
    col = jax.lax.broadcasted_iota(jnp.int32, (seq, seq), 1)
    causal = (col > row)[None, :, :]                    # (1, N, N)

    # One batched contraction over all heads & batches; K-transpose folds into the
    # dot_general (single leading batch dim -> clean Mosaic lowering).
    s = jnp.einsum('gqd,gkd->gqk', q, k,
                   preferred_element_type=jnp.float32)  # (H*B, N, N) f32
    s = jnp.where(causal, MASK_FILL, s)                 # masked_fill(mask_, -2**32+1)

    # One softmax over all heads/batches, exact division (f32 throughout).
    s = s - jnp.max(s, axis=-1, keepdims=True)
    p = jnp.exp(s)
    p = p / jnp.sum(p, axis=-1, keepdims=True)

    o = jnp.einsum('gqk,gkd->gqd', p.astype(jnp.bfloat16), v,
                   preferred_element_type=jnp.float32)  # (H*B, N, d_v) f32

    # Merge heads back to (B*N, H*d_v): leading-dim slices/reshapes + one lane concat
    # in head-major order, matching the row order of W_o.
    v_att = jnp.concatenate(
        [o[h * batch:(h + 1) * batch].reshape(batch * seq, D_V)
         for h in range(N_HEADS)], axis=-1)             # (B*N, H*d_v)

    attn_out = jnp.dot(v_att.astype(jnp.bfloat16), wo_ref[...],
                       preferred_element_type=jnp.float32)              # (B*N, D)
    # NOTE: dropout layers are identity (eval-mode semantics).

    gamma = ln_g_ref[...]                               # (1, D) f32
    beta = ln_b_ref[...]                                # (1, D) f32

    def layer_norm(y):
        # Single shared nn.LayerNorm in the module -> same gamma/beta for both uses.
        mu = jnp.mean(y, axis=-1, keepdims=True)
        var = jnp.mean((y - mu) * (y - mu), axis=-1, keepdims=True)
        return (y - mu) * jax.lax.rsqrt(var + LN_EPS) * gamma + beta

    X = layer_norm(x + attn_out)                        # layer_norm(Q + V_att)

    # FFN: linear2(relu(linear1(X))); weights pre-transposed to (in, out) & bf16.
    h1 = jnp.dot(X.astype(jnp.bfloat16), l1wt_ref[...],
                 preferred_element_type=jnp.float32) + l1b_ref[...]
    h1 = jnp.maximum(h1, 0.0)
    ffn = jnp.dot(h1.astype(jnp.bfloat16), l2wt_ref[...],
                  preferred_element_type=jnp.float32) + l2b_ref[...]

    out_ref[...] = layer_norm(ffn + X)                  # layer_norm(FFN(X) + X)


@jax.jit
def trm_encoder_forward(features, packed):
    """features: (B, N, D) f32; returns (B, N, D) f32.

    Batch element b is exactly the module's forward on one (weights, unload_port)
    pair (the module itself always uses batch=1 internally).  The batch is folded
    into the matmul M-dim and the attention batch dim -> a single kernel invocation."""
    b, n, d = features.shape
    feat2d = features.reshape(b * n, d)

    vmem = pl.BlockSpec(memory_space=pltpu.MemorySpace.VMEM)   # whole array, VMEM-resident
    kernel = functools.partial(_trm_kernel, batch=b, seq=n)

    out2d = pl.pallas_call(
        kernel,
        out_shape=jax.ShapeDtypeStruct((b * n, d), jnp.float32),
        in_specs=[vmem] * 9,
        out_specs=vmem,
    )(feat2d, packed["w_qkv"], packed["w_o"],
      packed["l1_wt"], packed["l1_b"], packed["l2_wt"], packed["l2_b"],
      packed["ln_g"], packed["ln_b"])
    return out2d.reshape(b, n, d)


def _xavier_normal(key, shape):
    fan_in, fan_out = shape
    std = (2.0 / (fan_in + fan_out)) ** 0.5
    return std * jax.random.normal(key, shape, jnp.float32)


def make_params(key):
    ks = jax.random.split(key, 12)
    d, h, dk, dv = INPUT_SIZE, N_HEADS, D_K, D_V
    return {
        "port_embed": jax.random.normal(ks[0], (4, dk), jnp.float32),   # nn.Embedding(4, d_k)
        "we_w": 0.1 * jax.random.normal(ks[1], (1, dk), jnp.float32),   # weight_embed (in,out)
        "we_b": 0.1 * jax.random.normal(ks[2], (dk,), jnp.float32),
        "W_q": _xavier_normal(ks[3], (d, h * dk)),
        "W_k": _xavier_normal(ks[4], (d, h * dk)),
        "W_v": _xavier_normal(ks[5], (d, h * dv)),
        "W_o": _xavier_normal(ks[6], (h * dv, d)),
        "l1_w": _xavier_normal(ks[7], (d, d)),                          # PyTorch (out, in)
        "l1_b": 0.1 * jax.random.normal(ks[8], (d,), jnp.float32),
        "l2_w": _xavier_normal(ks[9], (d, d)),
        "l2_b": 0.1 * jax.random.normal(ks[10], (d,), jnp.float32),
        "ln_g": jnp.ones((d,), jnp.float32),
        "ln_b": jnp.zeros((d,), jnp.float32),
    }


def pack_params(params):
    """One-time packing: fused QKV weight with the attention temperature folded into
    the Q columns, bf16 matmul weights, pre-transposed FFN weights, 2-D biases/LN."""
    d = INPUT_SIZE
    inv_temp = 1.0 / (float(D_K) ** 0.5 + ATTN_EPS)
    w_qkv = jnp.concatenate(
        [params["W_q"] * inv_temp, params["W_k"], params["W_v"]], axis=1)
    return {
        "w_qkv": w_qkv.astype(jnp.bfloat16),
        "w_o": params["W_o"].astype(jnp.bfloat16),
        "l1_wt": params["l1_w"].T.astype(jnp.bfloat16),
        "l1_b": params["l1_b"].reshape(1, d),
        "l2_wt": params["l2_w"].T.astype(jnp.bfloat16),
        "l2_b": params["l2_b"].reshape(1, d),
        "ln_g": params["ln_g"].reshape(1, d),
        "ln_b": params["ln_b"].reshape(1, d),
    }


def build_features(weights, unload_port, params):
    """Glue (same math as the module's forward): embedding gather + 1->d_k linear, sum."""
    lead = weights.shape                                                   # e.g. (B, SEQ)
    fea_port = jnp.take(params["port_embed"], unload_port.reshape(-1), axis=0)
    fea_w = weights.reshape(-1, 1).astype(jnp.float32) @ params["we_w"] + params["we_b"]
    return (fea_port + fea_w).reshape(lead + (D_K,)).astype(jnp.float32)   # (..., N, d_k)


def _reference_forward(features, params):
    """Pure-JAX f32 reference of the encoder block (eval-mode), for a (B, N, D) batch."""
    d, h, dk, dv = INPUT_SIZE, N_HEADS, D_K, D_V
    x = features
    bsz, n, _ = x.shape
    q = (x @ params["W_q"]).reshape(bsz, n, h, dk).transpose(0, 2, 1, 3)
    k = (x @ params["W_k"]).reshape(bsz, n, h, dk).transpose(0, 2, 1, 3)
    v = (x @ params["W_v"]).reshape(bsz, n, h, dv).transpose(0, 2, 1, 3)
    s = jnp.einsum('bhqd,bhkd->bhqk', q, k) / (float(dk) ** 0.5 + ATTN_EPS)
    mask = jnp.triu(jnp.ones((n, n), bool), k=1)
    s = jnp.where(mask, MASK_FILL, s)
    p = jax.nn.softmax(s, axis=-1)
    o = jnp.einsum('bhqk,bhkd->bhqd', p, v).transpose(0, 2, 1, 3).reshape(bsz, n, h * dv)
    attn = o @ params["W_o"]

    def ln(y):
        mu = y.mean(-1, keepdims=True)
        var = ((y - mu) ** 2).mean(-1, keepdims=True)
        return (y - mu) / jnp.sqrt(var + LN_EPS) * params["ln_g"] + params["ln_b"]

    X = ln(x + attn)
    h1 = jax.nn.relu(X @ params["l1_w"].T + params["l1_b"])
    ffn = h1 @ params["l2_w"].T + params["l2_b"]
    return ln(ffn + X)


if __name__ == "__main__":
    key = jax.random.PRNGKey(0)
    k_param, k_w, k_p = jax.random.split(key, 3)

    params = make_params(k_param)
    packed = pack_params(params)

    weights = jax.random.uniform(k_w, (BATCH, SEQ), jnp.float32)           # cargo weights
    unload_port = jax.random.randint(k_p, (BATCH, SEQ), 0, 4, jnp.int32)   # port ids [0,4)

    features = build_features(weights, unload_port, params)                # (B, N, D)
    out = trm_encoder_forward(features, packed)                            # (B, N, D)
    out = jax.block_until_ready(out)

    assert out.shape == (BATCH, SEQ, INPUT_SIZE)
    assert bool(jnp.all(jnp.isfinite(out)))

    # f32 reference; tolerance covers the bf16 MXU-operand quantization (review rec 3).
    ref = _reference_forward(features, params)
    assert bool(jnp.allclose(out, ref, rtol=5e-2, atol=5e-2)), \
        f"max abs diff {float(jnp.max(jnp.abs(out - ref)))}"

    print("KERNEL_OK")
</pallas_src>

<mosaic_0001>
module attributes {stable_mosaic.version = 11 : i64} {
  func.func @_trm_kernel(%arg0: memref<32x32xf32, #tpu.memory_space<vmem>>, %arg1: memref<32x384xbf16, #tpu.memory_space<vmem>>, %arg2: memref<128x32xbf16, #tpu.memory_space<vmem>>, %arg3: memref<32x32xbf16, #tpu.memory_space<vmem>>, %arg4: memref<1x32xf32, #tpu.memory_space<vmem>>, %arg5: memref<32x32xbf16, #tpu.memory_space<vmem>>, %arg6: memref<1x32xf32, #tpu.memory_space<vmem>>, %arg7: memref<1x32xf32, #tpu.memory_space<vmem>>, %arg8: memref<1x32xf32, #tpu.memory_space<vmem>>, %arg9: memref<32x32xf32, #tpu.memory_space<vmem>>) attributes {dimension_semantics = [], scalar_prefetch = 0 : i64, scratch_operands = 0 : i64, tpu.core_type = #tpu.core_type<tc>} {
    %c0 = arith.constant 0 : index
    %c0_0 = arith.constant 0 : index
    %0 = vector.load %arg0[%c0, %c0_0] : memref<32x32xf32, #tpu.memory_space<vmem>>, vector<32x32xf32>
    %1 = arith.truncf %0 : vector<32x32xf32> to vector<32x32xbf16>
    %c0_1 = arith.constant 0 : index
    %c0_2 = arith.constant 0 : index
    %2 = vector.load %arg1[%c0_1, %c0_2] : memref<32x384xbf16, #tpu.memory_space<vmem>>, vector<32x384xbf16>
    %cst = arith.constant dense<0.000000e+00> : vector<32x384xf32>
    %3 = tpu.matmul %1, %2, %cst {dimension_numbers = #tpu.dot_dimension_numbers<[1], [0], [0], [1], [0, 0, 1, 1], [], []>} : vector<32x32xbf16>, vector<32x384xbf16>, vector<32x384xf32> -> vector<32x384xf32>
    %4 = arith.truncf %3 : vector<32x384xf32> to vector<32x384xbf16>
    %5 = vector.extract_strided_slice %4 {offsets = [0, 0], sizes = [32, 128], strides = [1, 1]} : vector<32x384xbf16> to vector<32x128xbf16>
    %6 = vector.extract_strided_slice %5 {offsets = [0, 0], sizes = [32, 32], strides = [1, 1]} : vector<32x128xbf16> to vector<32x32xbf16>
    %7 = vector.shape_cast %6 : vector<32x32xbf16> to vector<4x8x32xbf16>
    %8 = vector.extract_strided_slice %5 {offsets = [0, 32], sizes = [32, 32], strides = [1, 1]} : vector<32x128xbf16> to vector<32x32xbf16>
    %9 = vector.shape_cast %8 : vector<32x32xbf16> to vector<4x8x32xbf16>
    %10 = vector.extract_strided_slice %5 {offsets = [0, 64], sizes = [32, 32], strides = [1, 1]} : vector<32x128xbf16> to vector<32x32xbf16>
    %11 = vector.shape_cast %10 : vector<32x32xbf16> to vector<4x8x32xbf16>
    %12 = vector.extract_strided_slice %5 {offsets = [0, 96], sizes = [32, 32], strides = [1, 1]} : vector<32x128xbf16> to vector<32x32xbf16>
    %13 = vector.shape_cast %12 : vector<32x32xbf16> to vector<4x8x32xbf16>
    %14 = tpu.concatenate %7, %9, %11, %13 in 0 : vector<4x8x32xbf16>, vector<4x8x32xbf16>, vector<4x8x32xbf16>, vector<4x8x32xbf16> -> vector<16x8x32xbf16>
    %15 = vector.extract_strided_slice %4 {offsets = [0, 128], sizes = [32, 128], strides = [1, 1]} : vector<32x384xbf16> to vector<32x128xbf16>
    %16 = vector.extract_strided_slice %15 {offsets = [0, 0], sizes = [32, 32], strides = [1, 1]} : vector<32x128xbf16> to vector<32x32xbf16>
    %17 = vector.shape_cast %16 : vector<32x32xbf16> to vector<4x8x32xbf16>
    %18 = vector.extract_strided_slice %15 {offsets = [0, 32], sizes = [32, 32], strides = [1, 1]} : vector<32x128xbf16> to vector<32x32xbf16>
    %19 = vector.shape_cast %18 : vector<32x32xbf16> to vector<4x8x32xbf16>
    %20 = vector.extract_strided_slice %15 {offsets = [0, 64], sizes = [32, 32], strides = [1, 1]} : vector<32x128xbf16> to vector<32x32xbf16>
    %21 = vector.shape_cast %20 : vector<32x32xbf16> to vector<4x8x32xbf16>
    %22 = vector.extract_strided_slice %15 {offsets = [0, 96], sizes = [32, 32], strides = [1, 1]} : vector<32x128xbf16> to vector<32x32xbf16>
    %23 = vector.shape_cast %22 : vector<32x32xbf16> to vector<4x8x32xbf16>
    %24 = tpu.concatenate %17, %19, %21, %23 in 0 : vector<4x8x32xbf16>, vector<4x8x32xbf16>, vector<4x8x32xbf16>, vector<4x8x32xbf16> -> vector<16x8x32xbf16>
    %25 = vector.extract_strided_slice %4 {offsets = [0, 256], sizes = [32, 128], strides = [1, 1]} : vector<32x384xbf16> to vector<32x128xbf16>
    %26 = vector.extract_strided_slice %25 {offsets = [0, 0], sizes = [32, 32], strides = [1, 1]} : vector<32x128xbf16> to vector<32x32xbf16>
    %27 = vector.shape_cast %26 : vector<32x32xbf16> to vector<4x8x32xbf16>
    %28 = vector.extract_strided_slice %25 {offsets = [0, 32], sizes = [32, 32], strides = [1, 1]} : vector<32x128xbf16> to vector<32x32xbf16>
    %29 = vector.shape_cast %28 : vector<32x32xbf16> to vector<4x8x32xbf16>
    %30 = vector.extract_strided_slice %25 {offsets = [0, 64], sizes = [32, 32], strides = [1, 1]} : vector<32x128xbf16> to vector<32x32xbf16>
    %31 = vector.shape_cast %30 : vector<32x32xbf16> to vector<4x8x32xbf16>
    %32 = vector.extract_strided_slice %25 {offsets = [0, 96], sizes = [32, 32], strides = [1, 1]} : vector<32x128xbf16> to vector<32x32xbf16>
    %33 = vector.shape_cast %32 : vector<32x32xbf16> to vector<4x8x32xbf16>
    %34 = tpu.concatenate %27, %29, %31, %33 in 0 : vector<4x8x32xbf16>, vector<4x8x32xbf16>, vector<4x8x32xbf16>, vector<4x8x32xbf16> -> vector<16x8x32xbf16>
    %35 = tpu.iota {dimensions = array<i32: 0>} : vector<8x8xi32>
    %36 = tpu.iota {dimensions = array<i32: 1>} : vector<8x8xi32>
    %37 = arith.cmpi sgt, %36, %35 : vector<8x8xi32>
    %38 = vector.shape_cast %37 : vector<8x8xi1> to vector<1x8x8xi1>
    "tpu.trace_start"() <{level = 10 : i32, message = "gqd,gkd->gqk"}> : () -> ()
    %cst_3 = arith.constant dense<0.000000e+00> : vector<16x8x8xf32>
    %39 = tpu.matmul %14, %24, %cst_3 {dimension_numbers = #tpu.dot_dimension_numbers<[2], [2], [1], [1], [0, 0, 0, 1, 1, 1], [0], [0]>} : vector<16x8x32xbf16>, vector<16x8x32xbf16>, vector<16x8x8xf32> -> vector<16x8x8xf32>
    %cst_4 = arith.constant -4.2949673E+9 : f32
    "tpu.trace_stop"() : () -> ()
    %40 = vector.shape_cast %38 : vector<1x8x8xi1> to vector<1x8x8xi1>
    %41 = vector.broadcast %40 : vector<1x8x8xi1> to vector<16x8x8xi1>
    %42 = vector.broadcast %cst_4 : f32 to vector<16x8x8xf32>
    %43 = arith.select %41, %42, %39 : vector<16x8x8xi1>, vector<16x8x8xf32>
    %cst_5 = arith.constant dense<0xFF800000> : vector<16x8xf32>
    %44 = vector.multi_reduction <maximumf>, %43, %cst_5 [2] : vector<16x8x8xf32> to vector<16x8xf32>
    %45 = vector.shape_cast %44 : vector<16x8xf32> to vector<16x8x1xf32>
    %46 = vector.broadcast %45 : vector<16x8x1xf32> to vector<16x8x8xf32>
    %47 = arith.subf %43, %46 : vector<16x8x8xf32>
    %48 = math.exp %47 : vector<16x8x8xf32>
    %cst_6 = arith.constant dense<0.000000e+00> : vector<16x8xf32>
    %49 = vector.multi_reduction <add>, %48, %cst_6 [2] : vector<16x8x8xf32> to vector<16x8xf32>
    %50 = vector.shape_cast %49 : vector<16x8xf32> to vector<16x8x1xf32>
    %51 = vector.broadcast %50 : vector<16x8x1xf32> to vector<16x8x8xf32>
    %52 = arith.divf %48, %51 : vector<16x8x8xf32>
    %53 = arith.truncf %52 : vector<16x8x8xf32> to vector<16x8x8xbf16>
    "tpu.trace_start"() <{level = 10 : i32, message = "gqk,gkd->gqd"}> : () -> ()
    %cst_7 = arith.constant dense<0.000000e+00> : vector<16x8x32xf32>
    %54 = tpu.matmul %53, %34, %cst_7 {dimension_numbers = #tpu.dot_dimension_numbers<[2], [1], [1], [2], [0, 0, 0, 1, 1, 2], [0], [0]>} : vector<16x8x8xbf16>, vector<16x8x32xbf16>, vector<16x8x32xf32> -> vector<16x8x32xf32>
    "tpu.trace_stop"() : () -> ()
    %55 = vector.extract_strided_slice %54 {offsets = [0, 0, 0], sizes = [4, 8, 32], strides = [1, 1, 1]} : vector<16x8x32xf32> to vector<4x8x32xf32>
    %56 = vector.shape_cast %55 : vector<4x8x32xf32> to vector<32x32xf32>
    %57 = vector.extract_strided_slice %54 {offsets = [4, 0, 0], sizes = [4, 8, 32], strides = [1, 1, 1]} : vector<16x8x32xf32> to vector<4x8x32xf32>
    %58 = vector.shape_cast %57 : vector<4x8x32xf32> to vector<32x32xf32>
    %59 = vector.extract_strided_slice %54 {offsets = [8, 0, 0], sizes = [4, 8, 32], strides = [1, 1, 1]} : vector<16x8x32xf32> to vector<4x8x32xf32>
    %60 = vector.shape_cast %59 : vector<4x8x32xf32> to vector<32x32xf32>
    %61 = vector.extract_strided_slice %54 {offsets = [12, 0, 0], sizes = [4, 8, 32], strides = [1, 1, 1]} : vector<16x8x32xf32> to vector<4x8x32xf32>
    %62 = vector.shape_cast %61 : vector<4x8x32xf32> to vector<32x32xf32>
    %63 = tpu.concatenate %56, %58, %60, %62 in 1 : vector<32x32xf32>, vector<32x32xf32>, vector<32x32xf32>, vector<32x32xf32> -> vector<32x128xf32>
    %64 = arith.truncf %63 : vector<32x128xf32> to vector<32x128xbf16>
    %c0_8 = arith.constant 0 : index
    %c0_9 = arith.constant 0 : index
    %65 = vector.load %arg2[%c0_8, %c0_9] : memref<128x32xbf16, #tpu.memory_space<vmem>>, vector<128x32xbf16>
    %cst_10 = arith.constant dense<0.000000e+00> : vector<32x32xf32>
    %66 = tpu.matmul %64, %65, %cst_10 {dimension_numbers = #tpu.dot_dimension_numbers<[1], [0], [0], [1], [0, 0, 1, 1], [], []>} : vector<32x128xbf16>, vector<128x32xbf16>, vector<32x32xf32> -> vector<32x32xf32>
    %c0_11 = arith.constant 0 : index
    %c0_12 = arith.constant 0 : index
    %67 = vector.load %arg7[%c0_11, %c0_12] : memref<1x32xf32, #tpu.memory_space<vmem>>, vector<1x32xf32>
    %c0_13 = arith.constant 0 : index
    %c0_14 = arith.constant 0 : index
    %68 = vector.load %arg8[%c0_13, %c0_14] : memref<1x32xf32, #tpu.memory_space<vmem>>, vector<1x32xf32>
    %69 = arith.addf %0, %66 : vector<32x32xf32>
    %cst_15 = arith.constant dense<0.000000e+00> : vector<32xf32>
    %70 = vector.multi_reduction <add>, %69, %cst_15 [1] : vector<32x32xf32> to vector<32xf32>
    %71 = vector.shape_cast %70 : vector<32xf32> to vector<32x1xf32>
    %cst_16 = arith.constant 3.200000e+01 : f32
    %72 = vector.broadcast %cst_16 : f32 to vector<32x1xf32>
    %73 = arith.divf %71, %72 : vector<32x1xf32>
    %74 = vector.broadcast %73 : vector<32x1xf32> to vector<32x32xf32>
    %75 = arith.subf %69, %74 : vector<32x32xf32>
    %76 = vector.broadcast %73 : vector<32x1xf32> to vector<32x32xf32>
    %77 = arith.subf %69, %76 : vector<32x32xf32>
    %78 = arith.mulf %75, %77 : vector<32x32xf32>
    %cst_17 = arith.constant dense<0.000000e+00> : vector<32xf32>
    %79 = vector.multi_reduction <add>, %78, %cst_17 [1] : vector<32x32xf32> to vector<32xf32>
    %80 = vector.shape_cast %79 : vector<32xf32> to vector<32x1xf32>
    %cst_18 = arith.constant 3.200000e+01 : f32
    %81 = vector.broadcast %cst_18 : f32 to vector<32x1xf32>
    %82 = arith.divf %80, %81 : vector<32x1xf32>
    %83 = vector.broadcast %73 : vector<32x1xf32> to vector<32x32xf32>
    %84 = arith.subf %69, %83 : vector<32x32xf32>
    %cst_19 = arith.constant 9.99999974E-6 : f32
    %85 = vector.broadcast %cst_19 : f32 to vector<32x1xf32>
    %86 = arith.addf %82, %85 : vector<32x1xf32>
    %87 = math.rsqrt %86 : vector<32x1xf32>
    %88 = vector.broadcast %87 : vector<32x1xf32> to vector<32x32xf32>
    %89 = arith.mulf %84, %88 : vector<32x32xf32>
    %90 = vector.broadcast %67 : vector<1x32xf32> to vector<32x32xf32>
    %91 = arith.mulf %89, %90 : vector<32x32xf32>
    %92 = vector.broadcast %68 : vector<1x32xf32> to vector<32x32xf32>
    %93 = arith.addf %91, %92 : vector<32x32xf32>
    %94 = arith.truncf %93 : vector<32x32xf32> to vector<32x32xbf16>
    %c0_20 = arith.constant 0 : index
    %c0_21 = arith.constant 0 : index
    %95 = vector.load %arg3[%c0_20, %c0_21] : memref<32x32xbf16, #tpu.memory_space<vmem>>, vector<32x32xbf16>
    %cst_22 = arith.constant dense<0.000000e+00> : vector<32x32xf32>
    %96 = tpu.matmul %94, %95, %cst_22 {dimension_numbers = #tpu.dot_dimension_numbers<[1], [0], [0], [1], [0, 0, 1, 1], [], []>} : vector<32x32xbf16>, vector<32x32xbf16>, vector<32x32xf32> -> vector<32x32xf32>
    %c0_23 = arith.constant 0 : index
    %c0_24 = arith.constant 0 : index
    %97 = vector.load %arg4[%c0_23, %c0_24] : memref<1x32xf32, #tpu.memory_space<vmem>>, vector<1x32xf32>
    %98 = vector.broadcast %97 : vector<1x32xf32> to vector<32x32xf32>
    %99 = arith.addf %96, %98 : vector<32x32xf32>
    %cst_25 = arith.constant 0.000000e+00 : f32
    %100 = vector.broadcast %cst_25 : f32 to vector<32x32xf32>
    %101 = arith.maximumf %99, %100 : vector<32x32xf32>
    %102 = arith.truncf %101 : vector<32x32xf32> to vector<32x32xbf16>
    %c0_26 = arith.constant 0 : index
    %c0_27 = arith.constant 0 : index
    %103 = vector.load %arg5[%c0_26, %c0_27] : memref<32x32xbf16, #tpu.memory_space<vmem>>, vector<32x32xbf16>
    %cst_28 = arith.constant dense<0.000000e+00> : vector<32x32xf32>
    %104 = tpu.matmul %102, %103, %cst_28 {dimension_numbers = #tpu.dot_dimension_numbers<[1], [0], [0], [1], [0, 0, 1, 1], [], []>} : vector<32x32xbf16>, vector<32x32xbf16>, vector<32x32xf32> -> vector<32x32xf32>
    %c0_29 = arith.constant 0 : index
    %c0_30 = arith.constant 0 : index
    %105 = vector.load %arg6[%c0_29, %c0_30] : memref<1x32xf32, #tpu.memory_space<vmem>>, vector<1x32xf32>
    %106 = vector.broadcast %105 : vector<1x32xf32> to vector<32x32xf32>
    %107 = arith.addf %104, %106 : vector<32x32xf32>
    %108 = arith.addf %107, %93 : vector<32x32xf32>
    %cst_31 = arith.constant dense<0.000000e+00> : vector<32xf32>
    %109 = vector.multi_reduction <add>, %108, %cst_31 [1] : vector<32x32xf32> to vector<32xf32>
    %110 = vector.shape_cast %109 : vector<32xf32> to vector<32x1xf32>
    %cst_32 = arith.constant 3.200000e+01 : f32
    %111 = vector.broadcast %cst_32 : f32 to vector<32x1xf32>
    %112 = arith.divf %110, %111 : vector<32x1xf32>
    %113 = vector.broadcast %112 : vector<32x1xf32> to vector<32x32xf32>
    %114 = arith.subf %108, %113 : vector<32x32xf32>
    %115 = vector.broadcast %112 : vector<32x1xf32> to vector<32x32xf32>
    %116 = arith.subf %108, %115 : vector<32x32xf32>
    %117 = arith.mulf %114, %116 : vector<32x32xf32>
    %cst_33 = arith.constant dense<0.000000e+00> : vector<32xf32>
    %118 = vector.multi_reduction <add>, %117, %cst_33 [1] : vector<32x32xf32> to vector<32xf32>
    %119 = vector.shape_cast %118 : vector<32xf32> to vector<32x1xf32>
    %cst_34 = arith.constant 3.200000e+01 : f32
    %120 = vector.broadcast %cst_34 : f32 to vector<32x1xf32>
    %121 = arith.divf %119, %120 : vector<32x1xf32>
    %122 = vector.broadcast %112 : vector<32x1xf32> to vector<32x32xf32>
    %123 = arith.subf %108, %122 : vector<32x32xf32>
    %cst_35 = arith.constant 9.99999974E-6 : f32
    %124 = vector.broadcast %cst_35 : f32 to vector<32x1xf32>
    %125 = arith.addf %121, %124 : vector<32x1xf32>
    %126 = math.rsqrt %125 : vector<32x1xf32>
    %127 = vector.broadcast %126 : vector<32x1xf32> to vector<32x32xf32>
    %128 = arith.mulf %123, %127 : vector<32x32xf32>
    %129 = vector.broadcast %67 : vector<1x32xf32> to vector<32x32xf32>
    %130 = arith.mulf %128, %129 : vector<32x32xf32>
    %131 = vector.broadcast %68 : vector<1x32xf32> to vector<32x32xf32>
    %132 = arith.addf %130, %131 : vector<32x32xf32>
    %c0_36 = arith.constant 0 : index
    %c0_37 = arith.constant 0 : index
    %133 = vector.load %arg9[%c0_36, %c0_37] : memref<32x32xf32, #tpu.memory_space<vmem>>, vector<32x32xf32>
    tpu.vector_store %arg9[%c0_36, %c0_37], %132 {strides = array<i32>} : memref<32x32xf32, #tpu.memory_space<vmem>>, vector<32x32xf32>,
    return
  }
}

</mosaic_0001>

<llo_original>
// kernel: trm_encoder_forward.1
$region0: #{trm_encoder_forward.1}
  #allocation0 [shape = 'u32[]', space=smem, size = 0x4, offset = 0x4, fixed_abs, tag = 'smem constant byte address 0x4 - core index']
  #allocation1 [shape = 'u32[72,128]{1,0:T(1,128)}', space=vmem, size = 0x9000, scoped, tag = 'internal scratch']
  %s0 = inlined_call_operand.vmem [shape: f32[32,32], index: 0, kind: input, shape index: {}]
  %s1 = inlined_call_operand.vmem [shape: bf16[32,384], index: 1, kind: input, shape index: {}]
  %s2 = inlined_call_operand.vmem [shape: bf16[128,32], index: 2, kind: input, shape index: {}]
  %s3 = inlined_call_operand.hbm [shape: bf16[32,32], index: 3, kind: input, shape index: {}]
  %s4 = inlined_call_operand.vmem [shape: f32[1,32], index: 4, kind: input, shape index: {}]
  %s5 = inlined_call_operand.hbm [shape: bf16[32,32], index: 5, kind: input, shape index: {}]
  %s6 = inlined_call_operand.vmem [shape: f32[1,32], index: 6, kind: input, shape index: {}]
  %s7 = inlined_call_operand.vmem [shape: f32[1,32], index: 7, kind: input, shape index: {}]
  %s8 = inlined_call_operand.vmem [shape: f32[1,32], index: 8, kind: input, shape index: {}]
  %s9 = inlined_call_operand.hbm [shape: f32[32,32], index: 9, kind: output, shape index: {}]
  %s10 = sld [smem:[#allocation0]]
  $region54: #{trm_encoder_forward.1} parent=0
    _
  %s12 = ssub.s32 1, %s10
  %s13 = scalar_select 0, %s12, %s10
  $region1: #{trm_encoder_forward.1} parent=0
    #allocation2 [shape = 'u8[8192]{0}', space=vmem, size = 0x2000, scoped, tag = 'input window, operand 3, single buffered']
    #allocation3 [shape = 's32[1]{0}', space=sflag, size = 0x4, scoped, tag = 'scoped memory for trm_encoder_forward.1']
    #allocation4 [shape = 's32[1]{0}', space=sflag, size = 0x4, scoped, tag = 'scoped memory for trm_encoder_forward.1']
    #allocation5 [shape = 'u8[8192]{0}', space=vmem, size = 0x2000, scoped, tag = 'input window, operand 5, single buffered']
    #allocation6 [shape = 's32[1]{0}', space=sflag, size = 0x4, scoped, tag = 'scoped memory for trm_encoder_forward.1']
    #allocation7 [shape = 'u8[16384]{0}', space=vmem, size = 0x4000, scoped, tag = 'output window, operand 0, single buffered']
    %14 = vsyncpa [#allocation3], 0
    %15 = vsyncpa [#allocation6], 0
    %16 = vsyncpa [#allocation4], 0
    // Predicated region
    $region2: #{trm_encoder_forward.1} parent=1 // pred_check
      _
    $region3: #{trm_encoder_forward.1} parent=1 // pred_check_branch
      %18 = sbr.rel (0) target = $region5
    $region4: #{trm_encoder_forward.1} parent=1 // pred_region
      _
    $region5: #{trm_encoder_forward.1} parent=1 // pred_fallthru
      _
    // Predicated region
    $region6: #{trm_encoder_forward.1} parent=1 // pred_check
      _
    $region7: #{trm_encoder_forward.1} parent=1 // pred_check_branch
      %20 = sbr.rel (0) target = $region9
    $region8: #{trm_encoder_forward.1} parent=1 // pred_region
      _
    $region9: #{trm_encoder_forward.1} parent=1 // pred_fallthru
      _
    // Predicated region
    $region10: #{trm_encoder_forward.1} parent=1 // pred_check
      _
    $region11: #{trm_encoder_forward.1} parent=1 // pred_check_branch
      %22 = sbr.rel (0) target = $region13
    $region12: #{trm_encoder_forward.1} parent=1 // pred_region
      _
    $region13: #{trm_encoder_forward.1} parent=1 // pred_fallthru
      _
    // Predicated region
    $region14: #{trm_encoder_forward.1} parent=1 // pred_check
      _
    $region15: #{trm_encoder_forward.1} parent=1 // pred_check_branch
      %24 = sbr.rel (0) target = $region17
    $region16: #{trm_encoder_forward.1} parent=1 // pred_region
      %26 = vsyncadd [#allocation3], 0
      %s27 = sshll.u32 %s3, 4
      %s28 = int_to_ptr.hbm [resolvable:$true] %s27
      %s29 = sshll.u32 [#allocation2], 4
      %s30 = int_to_ptr.vmem [resolvable:$true] %s29
      %35 = dma.hbm_to_vmem [thread:$0]  %s28, 256, %s30, [#allocation3], 64, 64, 4
    $region17: #{trm_encoder_forward.1} parent=1 // pred_fallthru
      _
    // Predicated region
    $region18: #{trm_encoder_forward.1} parent=1 // pred_check
      _
    $region19: #{trm_encoder_forward.1} parent=1 // pred_check_branch
      %37 = sbr.rel (0) target = $region21
    $region20: #{trm_encoder_forward.1} parent=1 // pred_region
      _
    $region21: #{trm_encoder_forward.1} parent=1 // pred_fallthru
      _
    // Predicated region
    $region22: #{trm_encoder_forward.1} parent=1 // pred_check
      _
    $region23: #{trm_encoder_forward.1} parent=1 // pred_check_branch
      %39 = sbr.rel (0) target = $region25
    $region24: #{trm_encoder_forward.1} parent=1 // pred_region
      %41 = vsyncadd [#allocation6], 0
      %s42 = sshll.u32 %s5, 4
      %s43 = int_to_ptr.hbm [resolvable:$true] %s42
      %s44 = sshll.u32 [#allocation5], 4
      %s45 = int_to_ptr.vmem [resolvable:$true] %s44
      %50 = dma.hbm_to_vmem [thread:$0]  %s43, 256, %s45, [#allocation6], 64, 64, 4
    $region25: #{trm_encoder_forward.1} parent=1 // pred_fallthru
      _
    // Predicated region
    $region26: #{trm_encoder_forward.1} parent=1 // pred_check
      _
    $region27: #{trm_encoder_forward.1} parent=1 // pred_check_branch
      %52 = sbr.rel (0) target = $region29
    $region28: #{trm_encoder_forward.1} parent=1 // pred_region
      _
    $region29: #{trm_encoder_forward.1} parent=1 // pred_fallthru
      _
    // Predicated region
    $region30: #{trm_encoder_forward.1} parent=1 // pred_check
      _
    $region31: #{trm_encoder_forward.1} parent=1 // pred_check_branch
      %54 = sbr.rel (0) target = $region33
    $region32: #{trm_encoder_forward.1} parent=1 // pred_region
      _
    $region33: #{trm_encoder_forward.1} parent=1 // pred_fallthru
      _
    // Predicated region
    $region34: #{trm_encoder_forward.1} parent=1 // pred_check
      _
    $region35: #{trm_encoder_forward.1} parent=1 // pred_check_branch
      %56 = sbr.rel (0) target = $region37
    $region36: #{trm_encoder_forward.1} parent=1 // pred_region
      _
    $region37: #{trm_encoder_forward.1} parent=1 // pred_fallthru
      _
    // Predicated region
    $region38: #{trm_encoder_forward.1} parent=1 // pred_check
      _
    $region39: #{trm_encoder_forward.1} parent=1 // pred_check_branch
      %58 = sbr.rel (0) target = $region41
    $region40: #{trm_encoder_forward.1} parent=1 // pred_region
      %60 = dma.done [#allocation3], 256
    $region41: #{trm_encoder_forward.1} parent=1 // pred_fallthru
      _
    // Predicated region
    $region42: #{trm_encoder_forward.1} parent=1 // pred_check
      _
    $region43: #{trm_encoder_forward.1} parent=1 // pred_check_branch
      %62 = sbr.rel (0) target = $region45
    $region44: #{trm_encoder_forward.1} parent=1 // pred_region
      %64 = dma.done [#allocation6], 256
    $region45: #{trm_encoder_forward.1} parent=1 // pred_fallthru
      _
    %v66 = vld [vmem:[%s0] sm:$0xff]
    %v67 = vld [vmem:[%s0 + $0x8] sm:$0xff]
    %v68 = vld [vmem:[%s0 + $0x10] sm:$0xff]
    %v69 = vld [vmem:[%s0 + $0x18] sm:$0xff]
    %v70 = vpack.c.bf16 %v67, %v66
    %v71 = vpack.c.bf16 %v69, %v68
    %v72 = vld [vmem:[%s1] sm:$0xff]
    %v73 = vld [vmem:[%s1 + $0x8] sm:$0xf]
    %v74 = vld [vmem:[%s1 + $0xc] sm:$0xff]
    %v75 = vld [vmem:[%s1 + $0x14] sm:$0xf]
    %v76 = vld [vmem:[%s1 + $0x18] sm:$0xff]
    %v77 = vld [vmem:[%s1 + $0x20] sm:$0xf]
    %v78 = vld [vmem:[%s1 + $0x24] sm:$0xff]
    %v79 = vld [vmem:[%s1 + $0x2c] sm:$0xf]
    %v88 = vunpack.c.l.b16 %v72
    %v89 = vunpack.c.h.b16 %v72
    %v90 = vunpack.c.l.b16 %v73
    %v91 = vunpack.c.l.b16 %v74
    %v92 = vunpack.c.h.b16 %v74
    %v93 = vunpack.c.l.b16 %v75
    %v94 = vunpack.c.l.b16 %v76
    %v95 = vunpack.c.h.b16 %v76
    %v96 = vunpack.c.l.b16 %v77
    %v97 = vunpack.c.l.b16 %v78
    %v98 = vunpack.c.h.b16 %v78
    %v99 = vunpack.c.l.b16 %v79
    %v100 = vpack.c.b16 %v91, %v88
    %v101 = vpack.c.b16 %v92, %v89
    %v102 = vpack.c.b16 %v93, %v90
    %v103 = vpack.c.b16 %v97, %v94
    %v104 = vpack.c.b16 %v98, %v95
    %v105 = vpack.c.b16 %v99, %v96
    %vm112 = vcmask 261120
    %v114 = vsel %vm112, %v70, 0
    %v117 = vsel %vm112, %v71, 0
    %119 = vmatpush.bf16.msra.mxu0 0
    %120 = vmatpush.bf16.msra.mxu0 0
    %121 = vmatpush.bf16.msra.mxu0 0
    %122 = vmatpush.bf16.msra.mxu0 0
    %123 = vmatpush.bf16.msra.mxu0 0
    %124 = vmatpush.bf16.msra.mxu0 0
    %125 = vmatpush.bf16.msra.mxu0 %v103
    %126 = vmatpush.bf16.msra.mxu0 %v100
    %127 = vmatmul.bf16.gmra.mxu0 %v114
    %v128 = vpop.f32.mrf.mxu0
    %v129 = vadd.f32 0.0, %v128
    %v130 = vpop.f32.mrf.mxu0
    %v131 = vadd.f32 0.0, %v130
    %132 = vmatmul.bf16.gmra.mxu0 %v117
    %v133 = vpop.f32.mrf.mxu0
    %v134 = vadd.f32 0.0, %v133
    %v135 = vpop.f32.mrf.mxu0
    %v136 = vadd.f32 0.0, %v135
    %137 = vdwg.mxu0
    %138 = vmatpush.bf16.msra.mxu0 0
    %139 = vmatpush.bf16.msra.mxu0 0
    %140 = vmatpush.bf16.msra.mxu0 0
    %141 = vmatpush.bf16.msra.mxu0 0
    %142 = vmatpush.bf16.msra.mxu0 0
    %143 = vmatpush.bf16.msra.mxu0 0
    %144 = vmatpush.bf16.msra.mxu0 %v104
    %145 = vmatpush.bf16.msra.mxu0 %v101
    %146 = vmatmul.bf16.gmra.mxu0 %v114
    %v147 = vpop.f32.mrf.mxu0
    %v148 = vadd.f32 0.0, %v147
    %v149 = vpop.f32.mrf.mxu0
    %v150 = vadd.f32 0.0, %v149
    %151 = vmatmul.bf16.gmra.mxu0 %v117
    %v152 = vpop.f32.mrf.mxu0
    %v153 = vadd.f32 0.0, %v152
    %v154 = vpop.f32.mrf.mxu0
    %v155 = vadd.f32 0.0, %v154
    %156 = vdwg.mxu0
    %157 = vmatpush.bf16.msra.mxu0 0
    %158 = vmatpush.bf16.msra.mxu0 0
    %159 = vmatpush.bf16.msra.mxu0 0
    %160 = vmatpush.bf16.msra.mxu0 0
    %161 = vmatpush.bf16.msra.mxu0 0
    %162 = vmatpush.bf16.msra.mxu0 0
    %163 = vmatpush.bf16.msra.mxu0 %v105
    %164 = vmatpush.bf16.msra.mxu0 %v102
    %165 = vmatmul.bf16.gmra.mxu0 %v114
    %v166 = vpop.f32.mrf.mxu0
    %v167 = vadd.f32 0.0, %v166
    %v168 = vpop.f32.mrf.mxu0
    %v169 = vadd.f32 0.0, %v168
    %170 = vmatmul.bf16.gmra.mxu0 %v117
    %v171 = vpop.f32.mrf.mxu0
    %v172 = vadd.f32 0.0, %v171
    %v173 = vpop.f32.mrf.mxu0
    %v174 = vadd.f32 0.0, %v173
    %175 = vdwg.mxu0
    %v176 = vpack.c.bf16 %v148, %v129
    %v177 = vpack.c.bf16 %v167, %v167
    %v178 = vpack.c.bf16 %v150, %v131
    %v179 = vpack.c.bf16 %v169, %v169
    %v180 = vpack.c.bf16 %v153, %v134
    %v181 = vpack.c.bf16 %v172, %v172
    %v182 = vpack.c.bf16 %v155, %v136
    %v183 = vpack.c.bf16 %v174, %v174
    %188 = vrot.lane.b32.xlu0 %v176, 96
    %v189 = vpop.permute.xlu0 %188
    %190 = vrot.lane.b32.xlu0 %v178, 96
    %v191 = vpop.permute.xlu0 %190
    %192 = vrot.lane.b32.xlu0 %v180, 96
    %v193 = vpop.permute.xlu0 %192
    %194 = vrot.lane.b32.xlu0 %v182, 96
    %v195 = vpop.permute.xlu0 %194
    %196 = vrot.lane.b32.xlu0 %v176, 64
    %v197 = vpop.permute.xlu0 %196
    %198 = vrot.lane.b32.xlu0 %v178, 64
    %v199 = vpop.permute.xlu0 %198
    %200 = vrot.lane.b32.xlu0 %v180, 64
    %v201 = vpop.permute.xlu0 %200
    %202 = vrot.lane.b32.xlu0 %v182, 64
    %v203 = vpop.permute.xlu0 %202
    %204 = vrot.lane.b32.xlu0 %v176, 32
    %v205 = vpop.permute.xlu0 %204
    %206 = vrot.lane.b32.xlu0 %v178, 32
    %v207 = vpop.permute.xlu0 %206
    %208 = vrot.lane.b32.xlu0 %v180, 32
    %v209 = vpop.permute.xlu0 %208
    %210 = vrot.lane.b32.xlu0 %v182, 32
    %v211 = vpop.permute.xlu0 %210
    %v212 = vrot.slane %v176, 4
    %v213 = vrot.slane %v178, 4
    %v214 = vrot.slane %v180, 4
    %v215 = vrot.slane %v182, 4
    %v216 = vrot.slane %v189, 4
    %v217 = vrot.slane %v191, 4
    %v218 = vrot.slane %v193, 4
    %v219 = vrot.slane %v195, 4
    %v220 = vrot.slane %v197, 4
    %v221 = vrot.slane %v199, 4
    %v222 = vrot.slane %v201, 4
    %v223 = vrot.slane %v203, 4
    %v224 = vrot.slane %v205, 4
    %v225 = vrot.slane %v207, 4
    %v226 = vrot.slane %v209, 4
    %v227 = vrot.slane %v211, 4
    %232 = vrot.lane.b32.xlu0 %v177, 96
    %v233 = vpop.permute.xlu0 %232
    %234 = vrot.lane.b32.xlu0 %v179, 96
    %v235 = vpop.permute.xlu0 %234
    %236 = vrot.lane.b32.xlu0 %v181, 96
    %v237 = vpop.permute.xlu0 %236
    %238 = vrot.lane.b32.xlu0 %v183, 96
    %v239 = vpop.permute.xlu0 %238
    %240 = vrot.lane.b32.xlu0 %v177, 64
    %v241 = vpop.permute.xlu0 %240
    %242 = vrot.lane.b32.xlu0 %v179, 64
    %v243 = vpop.permute.xlu0 %242
    %244 = vrot.lane.b32.xlu0 %v181, 64
    %v245 = vpop.permute.xlu0 %244
    %246 = vrot.lane.b32.xlu0 %v183, 64
    %v247 = vpop.permute.xlu0 %246
    %248 = vrot.lane.b32.xlu0 %v177, 32
    %v249 = vpop.permute.xlu0 %248
    %250 = vrot.lane.b32.xlu0 %v179, 32
    %v251 = vpop.permute.xlu0 %250
    %252 = vrot.lane.b32.xlu0 %v181, 32
    %v253 = vpop.permute.xlu0 %252
    %254 = vrot.lane.b32.xlu0 %v183, 32
    %v255 = vpop.permute.xlu0 %254
    %v256 = vlaneseq
    %v257 = vshrl.u32 %v256, 7
    %v258 = vlaneseq
    %v259 = vand.u32 %v258, 127
    %vm260 = vcmp.gt.s32.totalorder %v259, %v257
    %v262 = vsel %vm112, %v176, 0
    %v265 = vsel %vm112, %v212, 0
    %267 = vmatpush.bf16.xpose.msra.mxu0 0
    %268 = vmatpush.bf16.xpose.msra.mxu0 0
    %269 = vmatpush.bf16.xpose.msra.mxu0 0
    %270 = vmatpush.bf16.xpose.msra.mxu0 0
    %271 = vmatpush.bf16.xpose.msra.mxu0 0
    %272 = vmatpush.bf16.xpose.msra.mxu0 0
    %273 = vmatpush.bf16.xpose.msra.mxu0 0
    %274 = vmatpush.bf16.xpose.msra.mxu0 %v265
    %275 = vmatmul.bf16.gmra.mxu0 %v262
    %v276 = vpop.f32.mrf.mxu0
    %v277 = vadd.f32 0.0, %v276
    %v278 = vpop.f32.mrf.mxu0
    %279 = vdwg.mxu0
    %v281 = vsel %vm112, %v178, 0
    %v284 = vsel %vm112, %v213, 0
    %286 = vmatpush.bf16.xpose.msra.mxu0 0
    %287 = vmatpush.bf16.xpose.msra.mxu0 0
    %288 = vmatpush.bf16.xpose.msra.mxu0 0
    %289 = vmatpush.bf16.xpose.msra.mxu0 0
    %290 = vmatpush.bf16.xpose.msra.mxu0 0
    %291 = vmatpush.bf16.xpose.msra.mxu0 0
    %292 = vmatpush.bf16.xpose.msra.mxu0 0
    %293 = vmatpush.bf16.xpose.msra.mxu0 %v284
    %294 = vmatmul.bf16.gmra.mxu0 %v281
    %v295 = vpop.f32.mrf.mxu0
    %v296 = vadd.f32 0.0, %v295
    %v297 = vpop.f32.mrf.mxu0
    %298 = vdwg.mxu0
    %v300 = vsel %vm112, %v180, 0
    %v303 = vsel %vm112, %v214, 0
    %305 = vmatpush.bf16.xpose.msra.mxu0 0
    %306 = vmatpush.bf16.xpose.msra.mxu0 0
    %307 = vmatpush.bf16.xpose.msra.mxu0 0
    %308 = vmatpush.bf16.xpose.msra.mxu0 0
    %309 = vmatpush.bf16.xpose.msra.mxu0 0
    %310 = vmatpush.bf16.xpose.msra.mxu0 0
    %311 = vmatpush.bf16.xpose.msra.mxu0 0
    %312 = vmatpush.bf16.xpose.msra.mxu0 %v303
    %313 = vmatmul.bf16.gmra.mxu0 %v300
    %v314 = vpop.f32.mrf.mxu0
    %v315 = vadd.f32 0.0, %v314
    %v316 = vpop.f32.mrf.mxu0
    %317 = vdwg.mxu0
    %v319 = vsel %vm112, %v182, 0
    %v322 = vsel %vm112, %v215, 0
    %324 = vmatpush.bf16.xpose.msra.mxu0 0
    %325 = vmatpush.bf16.xpose.msra.mxu0 0
    %326 = vmatpush.bf16.xpose.msra.mxu0 0
    %327 = vmatpush.bf16.xpose.msra.mxu0 0
    %328 = vmatpush.bf16.xpose.msra.mxu0 0
    %329 = vmatpush.bf16.xpose.msra.mxu0 0
    %330 = vmatpush.bf16.xpose.msra.mxu0 0
    %331 = vmatpush.bf16.xpose.msra.mxu0 %v322
    %332 = vmatmul.bf16.gmra.mxu0 %v319
    %v333 = vpop.f32.mrf.mxu0
    %v334 = vadd.f32 0.0, %v333
    %v335 = vpop.f32.mrf.mxu0
    %336 = vdwg.mxu0
    %v338 = vsel %vm112, %v189, 0
    %v341 = vsel %vm112, %v216, 0
    %343 = vmatpush.bf16.xpose.msra.mxu0 0
    %344 = vmatpush.bf16.xpose.msra.mxu0 0
    %345 = vmatpush.bf16.xpose.msra.mxu0 0
    %346 = vmatpush.bf16.xpose.msra.mxu0 0
    %347 = vmatpush.bf16.xpose.msra.mxu0 0
    %348 = vmatpush.bf16.xpose.msra.mxu0 0
    %349 = vmatpush.bf16.xpose.msra.mxu0 0
    %350 = vmatpush.bf16.xpose.msra.mxu0 %v341
    %351 = vmatmul.bf16.gmra.mxu0 %v338
    %v352 = vpop.f32.mrf.mxu0
    %v353 = vadd.f32 0.0, %v352
    %v354 = vpop.f32.mrf.mxu0
    %355 = vdwg.mxu0
    %v357 = vsel %vm112, %v191, 0
    %v360 = vsel %vm112, %v217, 0
    %362 = vmatpush.bf16.xpose.msra.mxu0 0
    %363 = vmatpush.bf16.xpose.msra.mxu0 0
    %364 = vmatpush.bf16.xpose.msra.mxu0 0
    %365 = vmatpush.bf16.xpose.msra.mxu0 0
    %366 = vmatpush.bf16.xpose.msra.mxu0 0
    %367 = vmatpush.bf16.xpose.msra.mxu0 0
    %368 = vmatpush.bf16.xpose.msra.mxu0 0
    %369 = vmatpush.bf16.xpose.msra.mxu0 %v360
    %370 = vmatmul.bf16.gmra.mxu0 %v357
    %v371 = vpop.f32.mrf.mxu0
    %v372 = vadd.f32 0.0, %v371
    %v373 = vpop.f32.mrf.mxu0
    %374 = vdwg.mxu0
    %v376 = vsel %vm112, %v193, 0
    %v379 = vsel %vm112, %v218, 0
    %381 = vmatpush.bf16.xpose.msra.mxu0 0
    %382 = vmatpush.bf16.xpose.msra.mxu0 0
    %383 = vmatpush.bf16.xpose.msra.mxu0 0
    %384 = vmatpush.bf16.xpose.msra.mxu0 0
    %385 = vmatpush.bf16.xpose.msra.mxu0 0
    %386 = vmatpush.bf16.xpose.msra.mxu0 0
    %387 = vmatpush.bf16.xpose.msra.mxu0 0
    %388 = vmatpush.bf16.xpose.msra.mxu0 %v379
    %389 = vmatmul.bf16.gmra.mxu0 %v376
    %v390 = vpop.f32.mrf.mxu0
    %v391 = vadd.f32 0.0, %v390
    %v392 = vpop.f32.mrf.mxu0
    %393 = vdwg.mxu0
    %v395 = vsel %vm112, %v195, 0
    %v398 = vsel %vm112, %v219, 0
    %400 = vmatpush.bf16.xpose.msra.mxu0 0
    %401 = vmatpush.bf16.xpose.msra.mxu0 0
    %402 = vmatpush.bf16.xpose.msra.mxu0 0
    %403 = vmatpush.bf16.xpose.msra.mxu0 0
    %404 = vmatpush.bf16.xpose.msra.mxu0 0
    %405 = vmatpush.bf16.xpose.msra.mxu0 0
    %406 = vmatpush.bf16.xpose.msra.mxu0 0
    %407 = vmatpush.bf16.xpose.msra.mxu0 %v398
    %408 = vmatmul.bf16.gmra.mxu0 %v395
    %v409 = vpop.f32.mrf.mxu0
    %v410 = vadd.f32 0.0, %v409
    %v411 = vpop.f32.mrf.mxu0
    %412 = vdwg.mxu0
    %v414 = vsel %vm112, %v197, 0
    %v417 = vsel %vm112, %v220, 0
    %419 = vmatpush.bf16.xpose.msra.mxu0 0
    %420 = vmatpush.bf16.xpose.msra.mxu0 0
    %421 = vmatpush.bf16.xpose.msra.mxu0 0
    %422 = vmatpush.bf16.xpose.msra.mxu0 0
    %423 = vmatpush.bf16.xpose.msra.mxu0 0
    %424 = vmatpush.bf16.xpose.msra.mxu0 0
    %425 = vmatpush.bf16.xpose.msra.mxu0 0
    %426 = vmatpush.bf16.xpose.msra.mxu0 %v417
    %427 = vmatmul.bf16.gmra.mxu0 %v414
    %v428 = vpop.f32.mrf.mxu0
    %v429 = vadd.f32 0.0, %v428
    %v430 = vpop.f32.mrf.mxu0
    %431 = vdwg.mxu0
    %v433 = vsel %vm112, %v199, 0
    %v436 = vsel %vm112, %v221, 0
    %438 = vmatpush.bf16.xpose.msra.mxu0 0
    %439 = vmatpush.bf16.xpose.msra.mxu0 0
    %440 = vmatpush.bf16.xpose.msra.mxu0 0
    %441 = vmatpush.bf16.xpose.msra.mxu0 0
    %442 = vmatpush.bf16.xpose.msra.mxu0 0
    %443 = vmatpush.bf16.xpose.msra.mxu0 0
    %444 = vmatpush.bf16.xpose.msra.mxu0 0
    %445 = vmatpush.bf16.xpose.msra.mxu0 %v436
    %446 = vmatmul.bf16.gmra.mxu0 %v433
    %v447 = vpop.f32.mrf.mxu0
    %v448 = vadd.f32 0.0, %v447
    %v449 = vpop.f32.mrf.mxu0
    %450 = vdwg.mxu0
    %v452 = vsel %vm112, %v201, 0
    %v455 = vsel %vm112, %v222, 0
    %457 = vmatpush.bf16.xpose.msra.mxu0 0
    %458 = vmatpush.bf16.xpose.msra.mxu0 0
    %459 = vmatpush.bf16.xpose.msra.mxu0 0
    %460 = vmatpush.bf16.xpose.msra.mxu0 0
    %461 = vmatpush.bf16.xpose.msra.mxu0 0
    %462 = vmatpush.bf16.xpose.msra.mxu0 0
    %463 = vmatpush.bf16.xpose.msra.mxu0 0
    %464 = vmatpush.bf16.xpose.msra.mxu0 %v455
    %465 = vmatmul.bf16.gmra.mxu0 %v452
    %v466 = vpop.f32.mrf.mxu0
    %v467 = vadd.f32 0.0, %v466
    %v468 = vpop.f32.mrf.mxu0
    %469 = vdwg.mxu0
    %v471 = vsel %vm112, %v203, 0
    %v474 = vsel %vm112, %v223, 0
    %476 = vmatpush.bf16.xpose.msra.mxu0 0
    %477 = vmatpush.bf16.xpose.msra.mxu0 0
    %478 = vmatpush.bf16.xpose.msra.mxu0 0
    %479 = vmatpush.bf16.xpose.msra.mxu0 0
    %480 = vmatpush.bf16.xpose.msra.mxu0 0
    %481 = vmatpush.bf16.xpose.msra.mxu0 0
    %482 = vmatpush.bf16.xpose.msra.mxu0 0
    %483 = vmatpush.bf16.xpose.msra.mxu0 %v474
    %484 = vmatmul.bf16.gmra.mxu0 %v471
    %v485 = vpop.f32.mrf.mxu0
    %v486 = vadd.f32 0.0, %v485
    %v487 = vpop.f32.mrf.mxu0
    %488 = vdwg.mxu0
    %v490 = vsel %vm112, %v205, 0
    %v493 = vsel %vm112, %v224, 0
    %495 = vmatpush.bf16.xpose.msra.mxu0 0
    %496 = vmatpush.bf16.xpose.msra.mxu0 0
    %497 = vmatpush.bf16.xpose.msra.mxu0 0
    %498 = vmatpush.bf16.xpose.msra.mxu0 0
    %499 = vmatpush.bf16.xpose.msra.mxu0 0
    %500 = vmatpush.bf16.xpose.msra.mxu0 0
    %501 = vmatpush.bf16.xpose.msra.mxu0 0
    %502 = vmatpush.bf16.xpose.msra.mxu0 %v493
    %503 = vmatmul.bf16.gmra.mxu0 %v490
    %v504 = vpop.f32.mrf.mxu0
    %v505 = vadd.f32 0.0, %v504
    %v506 = vpop.f32.mrf.mxu0
    %507 = vdwg.mxu0
    %v509 = vsel %vm112, %v207, 0
    %v512 = vsel %vm112, %v225, 0
    %514 = vmatpush.bf16.xpose.msra.mxu0 0
    %515 = vmatpush.bf16.xpose.msra.mxu0 0
    %516 = vmatpush.bf16.xpose.msra.mxu0 0
    %517 = vmatpush.bf16.xpose.msra.mxu0 0
    %518 = vmatpush.bf16.xpose.msra.mxu0 0
    %519 = vmatpush.bf16.xpose.msra.mxu0 0
    %520 = vmatpush.bf16.xpose.msra.mxu0 0
    %521 = vmatpush.bf16.xpose.msra.mxu0 %v512
    %522 = vmatmul.bf16.gmra.mxu0 %v509
    %v523 = vpop.f32.mrf.mxu0
    %v524 = vadd.f32 0.0, %v523
    %v525 = vpop.f32.mrf.mxu0
    %526 = vdwg.mxu0
    %v528 = vsel %vm112, %v209, 0
    %v531 = vsel %vm112, %v226, 0
    %533 = vmatpush.bf16.xpose.msra.mxu0 0
    %534 = vmatpush.bf16.xpose.msra.mxu0 0
    %535 = vmatpush.bf16.xpose.msra.mxu0 0
    %536 = vmatpush.bf16.xpose.msra.mxu0 0
    %537 = vmatpush.bf16.xpose.msra.mxu0 0
    %538 = vmatpush.bf16.xpose.msra.mxu0 0
    %539 = vmatpush.bf16.xpose.msra.mxu0 0
    %540 = vmatpush.bf16.xpose.msra.mxu0 %v531
    %541 = vmatmul.bf16.gmra.mxu0 %v528
    %v542 = vpop.f32.mrf.mxu0
    %v543 = vadd.f32 0.0, %v542
    %v544 = vpop.f32.mrf.mxu0
    %545 = vdwg.mxu0
    %v547 = vsel %vm112, %v211, 0
    %v550 = vsel %vm112, %v227, 0
    %552 = vmatpush.bf16.xpose.msra.mxu0 0
    %553 = vmatpush.bf16.xpose.msra.mxu0 0
    %554 = vmatpush.bf16.xpose.msra.mxu0 0
    %555 = vmatpush.bf16.xpose.msra.mxu0 0
    %556 = vmatpush.bf16.xpose.msra.mxu0 0
    %557 = vmatpush.bf16.xpose.msra.mxu0 0
    %558 = vmatpush.bf16.xpose.msra.mxu0 0
    %559 = vmatpush.bf16.xpose.msra.mxu0 %v550
    %560 = vmatmul.bf16.gmra.mxu0 %v547
    %v561 = vpop.f32.mrf.mxu0
    %v562 = vadd.f32 0.0, %v561
    %v563 = vpop.f32.mrf.mxu0
    %564 = vdwg.mxu0
    %v565 = vsel %vm260, 1, 0
    %vm566 = vcmp.eq.s32.totalorder %v565, 1
    %v567 = vsel %vm566, -4.2949673e+09, %v277
    %v568 = vsel %vm566, -4.2949673e+09, %v296
    %v569 = vsel %vm566, -4.2949673e+09, %v315
    %v570 = vsel %vm566, -4.2949673e+09, %v334
    %v571 = vsel %vm566, -4.2949673e+09, %v353
    %v572 = vsel %vm566, -4.2949673e+09, %v372
    %v573 = vsel %vm566, -4.2949673e+09, %v391
    %v574 = vsel %vm566, -4.2949673e+09, %v410
    %v575 = vsel %vm566, -4.2949673e+09, %v429
    %v576 = vsel %vm566, -4.2949673e+09, %v448
    %v577 = vsel %vm566, -4.2949673e+09, %v467
    %v578 = vsel %vm566, -4.2949673e+09, %v486
    %v579 = vsel %vm566, -4.2949673e+09, %v505
    %v580 = vsel %vm566, -4.2949673e+09, %v524
    %v581 = vsel %vm566, -4.2949673e+09, %v543
    %v582 = vsel %vm566, -4.2949673e+09, %v562
    %vm583 = vcmask 64512
    %v584 = vsel %vm583, %v567, -inf
    %585 = vmax.xlane.f32.xlu0 %v584
    %v586 = vpop.xlane.xlu0 %585
    %v587 = vsel %vm583, %v568, -inf
    %588 = vmax.xlane.f32.xlu0 %v587
    %v589 = vpop.xlane.xlu0 %588
    %v590 = vsel %vm583, %v569, -inf
    %591 = vmax.xlane.f32.xlu0 %v590
    %v592 = vpop.xlane.xlu0 %591
    %v593 = vsel %vm583, %v570, -inf
    %594 = vmax.xlane.f32.xlu0 %v593
    %v595 = vpop.xlane.xlu0 %594
    %v596 = vsel %vm583, %v571, -inf
    %597 = vmax.xlane.f32.xlu0 %v596
    %v598 = vpop.xlane.xlu0 %597
    %v599 = vsel %vm583, %v572, -inf
    %600 = vmax.xlane.f32.xlu0 %v599
    %v601 = vpop.xlane.xlu0 %600
    %v602 = vsel %vm583, %v573, -inf
    %603 = vmax.xlane.f32.xlu0 %v602
    %v604 = vpop.xlane.xlu0 %603
    %v605 = vsel %vm583, %v574, -inf
    %606 = vmax.xlane.f32.xlu0 %v605
    %v607 = vpop.xlane.xlu0 %606
    %v608 = vsel %vm583, %v575, -inf
    %609 = vmax.xlane.f32.xlu0 %v608
    %v610 = vpop.xlane.xlu0 %609
    %v611 = vsel %vm583, %v576, -inf
    %612 = vmax.xlane.f32.xlu0 %v611
    %v613 = vpop.xlane.xlu0 %612
    %v614 = vsel %vm583, %v577, -inf
    %615 = vmax.xlane.f32.xlu0 %v614
    %v616 = vpop.xlane.xlu0 %615
    %v617 = vsel %vm583, %v578, -inf
    %618 = vmax.xlane.f32.xlu0 %v617
    %v619 = vpop.xlane.xlu0 %618
    %v620 = vsel %vm583, %v579, -inf
    %621 = vmax.xlane.f32.xlu0 %v620
    %v622 = vpop.xlane.xlu0 %621
    %v623 = vsel %vm583, %v580, -inf
    %624 = vmax.xlane.f32.xlu0 %v623
    %v625 = vpop.xlane.xlu0 %624
    %v626 = vsel %vm583, %v581, -inf
    %627 = vmax.xlane.f32.xlu0 %v626
    %v628 = vpop.xlane.xlu0 %627
    %v629 = vsel %vm583, %v582, -inf
    %630 = vmax.xlane.f32.xlu0 %v629
    %v631 = vpop.xlane.xlu0 %630
    %v632 = vsub.f32 %v567, %v586
    %v633 = vsub.f32 %v568, %v589
    %v634 = vsub.f32 %v569, %v592
    %v635 = vsub.f32 %v570, %v595
    %v636 = vsub.f32 %v571, %v598
    %v637 = vsub.f32 %v572, %v601
    %v638 = vsub.f32 %v573, %v604
    %v639 = vsub.f32 %v574, %v607
    %v640 = vsub.f32 %v575, %v610
    %v641 = vsub.f32 %v576, %v613
    %v642 = vsub.f32 %v577, %v616
    %v643 = vsub.f32 %v578, %v619
    %v644 = vsub.f32 %v579, %v622
    %v645 = vsub.f32 %v580, %v625
    %v646 = vsub.f32 %v581, %v628
    %v647 = vsub.f32 %v582, %v631
    %v648 = vmul.f32 %v632, 1.442695
    %v649 = vpow.pop %v648
    %v650 = vmul.f32 %v633, 1.442695
    %v651 = vpow.pop %v650
    %v652 = vmul.f32 %v634, 1.442695
    %v653 = vpow.pop %v652
    %v654 = vmul.f32 %v635, 1.442695
    %v655 = vpow.pop %v654
    %v656 = vmul.f32 %v636, 1.442695
    %v657 = vpow.pop %v656
    %v658 = vmul.f32 %v637, 1.442695
    %v659 = vpow.pop %v658
    %v660 = vmul.f32 %v638, 1.442695
    %v661 = vpow.pop %v660
    %v662 = vmul.f32 %v639, 1.442695
    %v663 = vpow.pop %v662
    %v664 = vmul.f32 %v640, 1.442695
    %v665 = vpow.pop %v664
    %v666 = vmul.f32 %v641, 1.442695
    %v667 = vpow.pop %v666
    %v668 = vmul.f32 %v642, 1.442695
    %v669 = vpow.pop %v668
    %v670 = vmul.f32 %v643, 1.442695
    %v671 = vpow.pop %v670
    %v672 = vmul.f32 %v644, 1.442695
    %v673 = vpow.pop %v672
    %v674 = vmul.f32 %v645, 1.442695
    %v675 = vpow.pop %v674
    %v676 = vmul.f32 %v646, 1.442695
    %v677 = vpow.pop %v676
    %v678 = vmul.f32 %v647, 1.442695
    %v679 = vpow.pop %v678
    %v680 = vsel %vm583, %v649, 0.0
    %681 = vadd.xlane.f32.xlu0 %v680
    %v682 = vpop.xlane.xlu0 %681
    %v683 = vsel %vm583, %v651, 0.0
    %684 = vadd.xlane.f32.xlu0 %v683
    %v685 = vpop.xlane.xlu0 %684
    %v686 = vsel %vm583, %v653, 0.0
    %687 = vadd.xlane.f32.xlu0 %v686
    %v688 = vpop.xlane.xlu0 %687
    %v689 = vsel %vm583, %v655, 0.0
    %690 = vadd.xlane.f32.xlu0 %v689
    %v691 = vpop.xlane.xlu0 %690
    %v692 = vsel %vm583, %v657, 0.0
    %693 = vadd.xlane.f32.xlu0 %v692
    %v694 = vpop.xlane.xlu0 %693
    %v695 = vsel %vm583, %v659, 0.0
    %696 = vadd.xlane.f32.xlu0 %v695
    %v697 = vpop.xlane.xlu0 %696
    %v698 = vsel %vm583, %v661, 0.0
    %699 = vadd.xlane.f32.xlu0 %v698
    %v700 = vpop.xlane.xlu0 %699
    %v701 = vsel %vm583, %v663, 0.0
    %702 = vadd.xlane.f32.xlu0 %v701
    %v703 = vpop.xlane.xlu0 %702
    %v704 = vsel %vm583, %v665, 0.0
    %705 = vadd.xlane.f32.xlu0 %v704
    %v706 = vpop.xlane.xlu0 %705
    %v707 = vsel %vm583, %v667, 0.0
    %708 = vadd.xlane.f32.xlu0 %v707
    %v709 = vpop.xlane.xlu0 %708
    %v710 = vsel %vm583, %v669, 0.0
    %711 = vadd.xlane.f32.xlu0 %v710
    %v712 = vpop.xlane.xlu0 %711
    %v713 = vsel %vm583, %v671, 0.0
    %714 = vadd.xlane.f32.xlu0 %v713
    %v715 = vpop.xlane.xlu0 %714
    %v716 = vsel %vm583, %v673, 0.0
    %717 = vadd.xlane.f32.xlu0 %v716
    %v718 = vpop.xlane.xlu0 %717
    %v719 = vsel %vm583, %v675, 0.0
    %720 = vadd.xlane.f32.xlu0 %v719
    %v721 = vpop.xlane.xlu0 %720
    %v722 = vsel %vm583, %v677, 0.0
    %723 = vadd.xlane.f32.xlu0 %v722
    %v724 = vpop.xlane.xlu0 %723
    %v725 = vsel %vm583, %v679, 0.0
    %726 = vadd.xlane.f32.xlu0 %v725
    %v727 = vpop.xlane.xlu0 %726
    %v728 = vrcp.pop %v682
    %v729 = vmul.f32 %v682, %v728
    %v730 = vsub.f32 1.0, %v729
    %v731 = vmul.f32 %v728, %v730
    %v732 = vadd.f32 %v728, %v731
    %vm733 = vweird.f32 %v682
    %vm734 = vweird.f32 %v728
    %vm735 = vmor %vm733, %vm734
    %v736 = vsel %vm735, %v728, %v732
    %v737 = vand.u32 2147483647, %v682
    %vm738 = vcmp.eq.f32.partialorder %v737, 8.507059e+37
    %v739 = vand.u32 %v682, 2147483648
    %v740 = vor.u32 1.1754944e-38, %v739
    %v741 = vsel %vm738, %v740, %v736
    %v742 = vmul.f32 %v649, %v741
    %v743 = vrcp.pop %v685
    %v744 = vmul.f32 %v685, %v743
    %v745 = vsub.f32 1.0, %v744
    %v746 = vmul.f32 %v743, %v745
    %v747 = vadd.f32 %v743, %v746
    %vm748 = vweird.f32 %v685
    %vm749 = vweird.f32 %v743
    %vm750 = vmor %vm748, %vm749
    %v751 = vsel %vm750, %v743, %v747
    %v752 = vand.u32 2147483647, %v685
    %vm753 = vcmp.eq.f32.partialorder %v752, 8.507059e+37
    %v754 = vand.u32 %v685, 2147483648
    %v755 = vor.u32 1.1754944e-38, %v754
    %v756 = vsel %vm753, %v755, %v751
    %v757 = vmul.f32 %v651, %v756
    %v758 = vrcp.pop %v688
    %v759 = vmul.f32 %v688, %v758
    %v760 = vsub.f32 1.0, %v759
    %v761 = vmul.f32 %v758, %v760
    %v762 = vadd.f32 %v758, %v761
    %vm763 = vweird.f32 %v688
    %vm764 = vweird.f32 %v758
    %vm765 = vmor %vm763, %vm764
    %v766 = vsel %vm765, %v758, %v762
    %v767 = vand.u32 2147483647, %v688
    %vm768 = vcmp.eq.f32.partialorder %v767, 8.507059e+37
    %v769 = vand.u32 %v688, 2147483648
    %v770 = vor.u32 1.1754944e-38, %v769
    %v771 = vsel %vm768, %v770, %v766
    %v772 = vmul.f32 %v653, %v771
    %v773 = vrcp.pop %v691
    %v774 = vmul.f32 %v691, %v773
    %v775 = vsub.f32 1.0, %v774
    %v776 = vmul.f32 %v773, %v775
    %v777 = vadd.f32 %v773, %v776
    %vm778 = vweird.f32 %v691
    %vm779 = vweird.f32 %v773
    %vm780 = vmor %vm778, %vm779
    %v781 = vsel %vm780, %v773, %v777
    %v782 = vand.u32 2147483647, %v691
    %vm783 = vcmp.eq.f32.partialorder %v782, 8.507059e+37
    %v784 = vand.u32 %v691, 2147483648
    %v785 = vor.u32 1.1754944e-38, %v784
    %v786 = vsel %vm783, %v785, %v781
    %v787 = vmul.f32 %v655, %v786
    %v788 = vrcp.pop %v694
    %v789 = vmul.f32 %v694, %v788
    %v790 = vsub.f32 1.0, %v789
    %v791 = vmul.f32 %v788, %v790
    %v792 = vadd.f32 %v788, %v791
    %vm793 = vweird.f32 %v694
    %vm794 = vweird.f32 %v788
    %vm795 = vmor %vm793, %vm794
    %v796 = vsel %vm795, %v788, %v792
    %v797 = vand.u32 2147483647, %v694
    %vm798 = vcmp.eq.f32.partialorder %v797, 8.507059e+37
    %v799 = vand.u32 %v694, 2147483648
    %v800 = vor.u32 1.1754944e-38, %v799
    %v801 = vsel %vm798, %v800, %v796
    %v802 = vmul.f32 %v657, %v801
    %v803 = vrcp.pop %v697
    %v804 = vmul.f32 %v697, %v803
    %v805 = vsub.f32 1.0, %v804
    %v806 = vmul.f32 %v803, %v805
    %v807 = vadd.f32 %v803, %v806
    %vm808 = vweird.f32 %v697
    %vm809 = vweird.f32 %v803
    %vm810 = vmor %vm808, %vm809
    %v811 = vsel %vm810, %v803, %v807
    %v812 = vand.u32 2147483647, %v697
    %vm813 = vcmp.eq.f32.partialorder %v812, 8.507059e+37
    %v814 = vand.u32 %v697, 2147483648
    %v815 = vor.u32 1.1754944e-38, %v814
    %v816 = vsel %vm813, %v815, %v811
    %v817 = vmul.f32 %v659, %v816
    %v818 = vrcp.pop %v700
    %v819 = vmul.f32 %v700, %v818
    %v820 = vsub.f32 1.0, %v819
    %v821 = vmul.f32 %v818, %v820
    %v822 = vadd.f32 %v818, %v821
    %vm823 = vweird.f32 %v700
    %vm824 = vweird.f32 %v818
    %vm825 = vmor %vm823, %vm824
    %v826 = vsel %vm825, %v818, %v822
    %v827 = vand.u32 2147483647, %v700
    %vm828 = vcmp.eq.f32.partialorder %v827, 8.507059e+37
    %v829 = vand.u32 %v700, 2147483648
    %v830 = vor.u32 1.1754944e-38, %v829
    %v831 = vsel %vm828, %v830, %v826
    %v832 = vmul.f32 %v661, %v831
    %v833 = vrcp.pop %v703
    %v834 = vmul.f32 %v703, %v833
    %v835 = vsub.f32 1.0, %v834
    %v836 = vmul.f32 %v833, %v835
    %v837 = vadd.f32 %v833, %v836
    %vm838 = vweird.f32 %v703
    %vm839 = vweird.f32 %v833
    %vm840 = vmor %vm838, %vm839
    %v841 = vsel %vm840, %v833, %v837
    %v842 = vand.u32 2147483647, %v703
    %vm843 = vcmp.eq.f32.partialorder %v842, 8.507059e+37
    %v844 = vand.u32 %v703, 2147483648
    %v845 = vor.u32 1.1754944e-38, %v844
    %v846 = vsel %vm843, %v845, %v841
    %v847 = vmul.f32 %v663, %v846
    %v848 = vrcp.pop %v706
    %v849 = vmul.f32 %v706, %v848
    %v850 = vsub.f32 1.0, %v849
    %v851 = vmul.f32 %v848, %v850
    %v852 = vadd.f32 %v848, %v851
    %vm853 = vweird.f32 %v706
    %vm854 = vweird.f32 %v848
    %vm855 = vmor %vm853, %vm854
    %v856 = vsel %vm855, %v848, %v852
    %v857 = vand.u32 2147483647, %v706
    %vm858 = vcmp.eq.f32.partialorder %v857, 8.507059e+37
    %v859 = vand.u32 %v706, 2147483648
    %v860 = vor.u32 1.1754944e-38, %v859
    %v861 = vsel %vm858, %v860, %v856
    %v862 = vmul.f32 %v665, %v861
    %v863 = vrcp.pop %v709
    %v864 = vmul.f32 %v709, %v863
    %v865 = vsub.f32 1.0, %v864
    %v866 = vmul.f32 %v863, %v865
    %v867 = vadd.f32 %v863, %v866
    %vm868 = vweird.f32 %v709
    %vm869 = vweird.f32 %v863
    %vm870 = vmor %vm868, %vm869
    %v871 = vsel %vm870, %v863, %v867
    %v872 = vand.u32 2147483647, %v709
    %vm873 = vcmp.eq.f32.partialorder %v872, 8.507059e+37
    %v874 = vand.u32 %v709, 2147483648
    %v875 = vor.u32 1.1754944e-38, %v874
    %v876 = vsel %vm873, %v875, %v871
    %v877 = vmul.f32 %v667, %v876
    %v878 = vrcp.pop %v712
    %v879 = vmul.f32 %v712, %v878
    %v880 = vsub.f32 1.0, %v879
    %v881 = vmul.f32 %v878, %v880
    %v882 = vadd.f32 %v878, %v881
    %vm883 = vweird.f32 %v712
    %vm884 = vweird.f32 %v878
    %vm885 = vmor %vm883, %vm884
    %v886 = vsel %vm885, %v878, %v882
    %v887 = vand.u32 2147483647, %v712
    %vm888 = vcmp.eq.f32.partialorder %v887, 8.507059e+37
    %v889 = vand.u32 %v712, 2147483648
    %v890 = vor.u32 1.1754944e-38, %v889
    %v891 = vsel %vm888, %v890, %v886
    %v892 = vmul.f32 %v669, %v891
    %v893 = vrcp.pop %v715
    %v894 = vmul.f32 %v715, %v893
    %v895 = vsub.f32 1.0, %v894
    %v896 = vmul.f32 %v893, %v895
    %v897 = vadd.f32 %v893, %v896
    %vm898 = vweird.f32 %v715
    %vm899 = vweird.f32 %v893
    %vm900 = vmor %vm898, %vm899
    %v901 = vsel %vm900, %v893, %v897
    %v902 = vand.u32 2147483647, %v715
    %vm903 = vcmp.eq.f32.partialorder %v902, 8.507059e+37
    %v904 = vand.u32 %v715, 2147483648
    %v905 = vor.u32 1.1754944e-38, %v904
    %v906 = vsel %vm903, %v905, %v901
    %v907 = vmul.f32 %v671, %v906
    %v908 = vrcp.pop %v718
    %v909 = vmul.f32 %v718, %v908
    %v910 = vsub.f32 1.0, %v909
    %v911 = vmul.f32 %v908, %v910
    %v912 = vadd.f32 %v908, %v911
    %vm913 = vweird.f32 %v718
    %vm914 = vweird.f32 %v908
    %vm915 = vmor %vm913, %vm914
    %v916 = vsel %vm915, %v908, %v912
    %v917 = vand.u32 2147483647, %v718
    %vm918 = vcmp.eq.f32.partialorder %v917, 8.507059e+37
    %v919 = vand.u32 %v718, 2147483648
    %v920 = vor.u32 1.1754944e-38, %v919
    %v921 = vsel %vm918, %v920, %v916
    %v922 = vmul.f32 %v673, %v921
    %v923 = vrcp.pop %v721
    %v924 = vmul.f32 %v721, %v923
    %v925 = vsub.f32 1.0, %v924
    %v926 = vmul.f32 %v923, %v925
    %v927 = vadd.f32 %v923, %v926
    %vm928 = vweird.f32 %v721
    %vm929 = vweird.f32 %v923
    %vm930 = vmor %vm928, %vm929
    %v931 = vsel %vm930, %v923, %v927
    %v932 = vand.u32 2147483647, %v721
    %vm933 = vcmp.eq.f32.partialorder %v932, 8.507059e+37
    %v934 = vand.u32 %v721, 2147483648
    %v935 = vor.u32 1.1754944e-38, %v934
    %v936 = vsel %vm933, %v935, %v931
    %v937 = vmul.f32 %v675, %v936
    %v938 = vrcp.pop %v724
    %v939 = vmul.f32 %v724, %v938
    %v940 = vsub.f32 1.0, %v939
    %v941 = vmul.f32 %v938, %v940
    %v942 = vadd.f32 %v938, %v941
    %vm943 = vweird.f32 %v724
    %vm944 = vweird.f32 %v938
    %vm945 = vmor %vm943, %vm944
    %v946 = vsel %vm945, %v938, %v942
    %v947 = vand.u32 2147483647, %v724
    %vm948 = vcmp.eq.f32.partialorder %v947, 8.507059e+37
    %v949 = vand.u32 %v724, 2147483648
    %v950 = vor.u32 1.1754944e-38, %v949
    %v951 = vsel %vm948, %v950, %v946
    %v952 = vmul.f32 %v677, %v951
    %v953 = vrcp.pop %v727
    %v954 = vmul.f32 %v727, %v953
    %v955 = vsub.f32 1.0, %v954
    %v956 = vmul.f32 %v953, %v955
    %v957 = vadd.f32 %v953, %v956
    %vm958 = vweird.f32 %v727
    %vm959 = vweird.f32 %v953
    %vm960 = vmor %vm958, %vm959
    %v961 = vsel %vm960, %v953, %v957
    %v962 = vand.u32 2147483647, %v727
    %vm963 = vcmp.eq.f32.partialorder %v962, 8.507059e+37
    %v964 = vand.u32 %v727, 2147483648
    %v965 = vor.u32 1.1754944e-38, %v964
    %v966 = vsel %vm963, %v965, %v961
    %v967 = vmul.f32 %v679, %v966
    %v968 = vpack.c.bf16 %v742, %v742
    %v969 = vpack.c.bf16 %v757, %v757
    %v970 = vpack.c.bf16 %v772, %v772
    %v971 = vpack.c.bf16 %v787, %v787
    %v972 = vpack.c.bf16 %v802, %v802
    %v973 = vpack.c.bf16 %v817, %v817
    %v974 = vpack.c.bf16 %v832, %v832
    %v975 = vpack.c.bf16 %v847, %v847
    %v976 = vpack.c.bf16 %v862, %v862
    %v977 = vpack.c.bf16 %v877, %v877
    %v978 = vpack.c.bf16 %v892, %v892
    %v979 = vpack.c.bf16 %v907, %v907
    %v980 = vpack.c.bf16 %v922, %v922
    %v981 = vpack.c.bf16 %v937, %v937
    %v982 = vpack.c.bf16 %v952, %v952
    %v983 = vpack.c.bf16 %v967, %v967
    %v985 = vsel %vm583, %v968, 0
    %vm987 = vcmask 1043456
    %v989 = vsel %vm987, %v177, 0
    %991 = vmatpush.bf16.msra.mxu0 0
    %992 = vmatpush.bf16.msra.mxu0 0
    %993 = vmatpush.bf16.msra.mxu0 0
    %994 = vmatpush.bf16.msra.mxu0 0
    %995 = vmatpush.bf16.msra.mxu0 0
    %996 = vmatpush.bf16.msra.mxu0 0
    %997 = vmatpush.bf16.msra.mxu0 0
    %998 = vmatpush.bf16.msra.mxu0 %v989
    %999 = vmatmul.bf16.gmra.mxu0 %v985
    %v1000 = vpop.f32.mrf.mxu0
    %v1001 = vadd.f32 0.0, %v1000
    %v1002 = vpop.f32.mrf.mxu0
    %1003 = vdwg.mxu0
    %v1005 = vsel %vm583, %v969, 0
    %v1008 = vsel %vm987, %v179, 0
    %1010 = vmatpush.bf16.msra.mxu0 0
    %1011 = vmatpush.bf16.msra.mxu0 0
    %1012 = vmatpush.bf16.msra.mxu0 0
    %1013 = vmatpush.bf16.msra.mxu0 0
    %1014 = vmatpush.bf16.msra.mxu0 0
    %1015 = vmatpush.bf16.msra.mxu0 0
    %1016 = vmatpush.bf16.msra.mxu0 0
    %1017 = vmatpush.bf16.msra.mxu0 %v1008
    %1018 = vmatmul.bf16.gmra.mxu0 %v1005
    %v1019 = vpop.f32.mrf.mxu0
    %v1020 = vadd.f32 0.0, %v1019
    %v1021 = vpop.f32.mrf.mxu0
    %1022 = vdwg.mxu0
    %v1024 = vsel %vm583, %v970, 0
    %v1027 = vsel %vm987, %v181, 0
    %1029 = vmatpush.bf16.msra.mxu0 0
    %1030 = vmatpush.bf16.msra.mxu0 0
    %1031 = vmatpush.bf16.msra.mxu0 0
    %1032 = vmatpush.bf16.msra.mxu0 0
    %1033 = vmatpush.bf16.msra.mxu0 0
    %1034 = vmatpush.bf16.msra.mxu0 0
    %1035 = vmatpush.bf16.msra.mxu0 0
    %1036 = vmatpush.bf16.msra.mxu0 %v1027
    %1037 = vmatmul.bf16.gmra.mxu0 %v1024
    %v1038 = vpop.f32.mrf.mxu0
    %v1039 = vadd.f32 0.0, %v1038
    %v1040 = vpop.f32.mrf.mxu0
    %1041 = vdwg.mxu0
    %v1043 = vsel %vm583, %v971, 0
    %v1046 = vsel %vm987, %v183, 0
    %1048 = vmatpush.bf16.msra.mxu0 0
    %1049 = vmatpush.bf16.msra.mxu0 0
    %1050 = vmatpush.bf16.msra.mxu0 0
    %1051 = vmatpush.bf16.msra.mxu0 0
    %1052 = vmatpush.bf16.msra.mxu0 0
    %1053 = vmatpush.bf16.msra.mxu0 0
    %1054 = vmatpush.bf16.msra.mxu0 0
    %1055 = vmatpush.bf16.msra.mxu0 %v1046
    %1056 = vmatmul.bf16.gmra.mxu0 %v1043
    %v1057 = vpop.f32.mrf.mxu0
    %v1058 = vadd.f32 0.0, %v1057
    %v1059 = vpop.f32.mrf.mxu0
    %1060 = vdwg.mxu0
    %v1062 = vsel %vm583, %v972, 0
    %v1065 = vsel %vm987, %v233, 0
    %1067 = vmatpush.bf16.msra.mxu0 0
    %1068 = vmatpush.bf16.msra.mxu0 0
    %1069 = vmatpush.bf16.msra.mxu0 0
    %1070 = vmatpush.bf16.msra.mxu0 0
    %1071 = vmatpush.bf16.msra.mxu0 0
    %1072 = vmatpush.bf16.msra.mxu0 0
    %1073 = vmatpush.bf16.msra.mxu0 0
    %1074 = vmatpush.bf16.msra.mxu0 %v1065
    %1075 = vmatmul.bf16.gmra.mxu0 %v1062
    %v1076 = vpop.f32.mrf.mxu0
    %v1077 = vadd.f32 0.0, %v1076
    %v1078 = vpop.f32.mrf.mxu0
    %1079 = vdwg.mxu0
    %v1081 = vsel %vm583, %v973, 0
    %v1084 = vsel %vm987, %v235, 0
    %1086 = vmatpush.bf16.msra.mxu0 0
    %1087 = vmatpush.bf16.msra.mxu0 0
    %1088 = vmatpush.bf16.msra.mxu0 0
    %1089 = vmatpush.bf16.msra.mxu0 0
    %1090 = vmatpush.bf16.msra.mxu0 0
    %1091 = vmatpush.bf16.msra.mxu0 0
    %1092 = vmatpush.bf16.msra.mxu0 0
    %1093 = vmatpush.bf16.msra.mxu0 %v1084
    %1094 = vmatmul.bf16.gmra.mxu0 %v1081
    %v1095 = vpop.f32.mrf.mxu0
    %v1096 = vadd.f32 0.0, %v1095
    %v1097 = vpop.f32.mrf.mxu0
    %1098 = vdwg.mxu0
    %v1100 = vsel %vm583, %v974, 0
    %v1103 = vsel %vm987, %v237, 0
    %1105 = vmatpush.bf16.msra.mxu0 0
    %1106 = vmatpush.bf16.msra.mxu0 0
    %1107 = vmatpush.bf16.msra.mxu0 0
    %1108 = vmatpush.bf16.msra.mxu0 0
    %1109 = vmatpush.bf16.msra.mxu0 0
    %1110 = vmatpush.bf16.msra.mxu0 0
    %1111 = vmatpush.bf16.msra.mxu0 0
    %1112 = vmatpush.bf16.msra.mxu0 %v1103
    %1113 = vmatmul.bf16.gmra.mxu0 %v1100
    %v1114 = vpop.f32.mrf.mxu0
    %v1115 = vadd.f32 0.0, %v1114
    %v1116 = vpop.f32.mrf.mxu0
    %1117 = vdwg.mxu0
    %v1119 = vsel %vm583, %v975, 0
    %v1122 = vsel %vm987, %v239, 0
    %1124 = vmatpush.bf16.msra.mxu0 0
    %1125 = vmatpush.bf16.msra.mxu0 0
    %1126 = vmatpush.bf16.msra.mxu0 0
    %1127 = vmatpush.bf16.msra.mxu0 0
    %1128 = vmatpush.bf16.msra.mxu0 0
    %1129 = vmatpush.bf16.msra.mxu0 0
    %1130 = vmatpush.bf16.msra.mxu0 0
    %1131 = vmatpush.bf16.msra.mxu0 %v1122
    %1132 = vmatmul.bf16.gmra.mxu0 %v1119
    %v1133 = vpop.f32.mrf.mxu0
    %v1134 = vadd.f32 0.0, %v1133
    %v1135 = vpop.f32.mrf.mxu0
    %1136 = vdwg.mxu0
    %v1138 = vsel %vm583, %v976, 0
    %v1141 = vsel %vm987, %v241, 0
    %1143 = vmatpush.bf16.msra.mxu0 0
    %1144 = vmatpush.bf16.msra.mxu0 0
    %1145 = vmatpush.bf16.msra.mxu0 0
    %1146 = vmatpush.bf16.msra.mxu0 0
    %1147 = vmatpush.bf16.msra.mxu0 0
    %1148 = vmatpush.bf16.msra.mxu0 0
    %1149 = vmatpush.bf16.msra.mxu0 0
    %1150 = vmatpush.bf16.msra.mxu0 %v1141
    %1151 = vmatmul.bf16.gmra.mxu0 %v1138
    %v1152 = vpop.f32.mrf.mxu0
    %v1153 = vadd.f32 0.0, %v1152
    %v1154 = vpop.f32.mrf.mxu0
    %1155 = vdwg.mxu0
    %v1157 = vsel %vm583, %v977, 0
    %v1160 = vsel %vm987, %v243, 0
    %1162 = vmatpush.bf16.msra.mxu0 0
    %1163 = vmatpush.bf16.msra.mxu0 0
    %1164 = vmatpush.bf16.msra.mxu0 0
    %1165 = vmatpush.bf16.msra.mxu0 0
    %1166 = vmatpush.bf16.msra.mxu0 0
    %1167 = vmatpush.bf16.msra.mxu0 0
    %1168 = vmatpush.bf16.msra.mxu0 0
    %1169 = vmatpush.bf16.msra.mxu0 %v1160
    %1170 = vmatmul.bf16.gmra.mxu0 %v1157
    %v1171 = vpop.f32.mrf.mxu0
    %v1172 = vadd.f32 0.0, %v1171
    %v1173 = vpop.f32.mrf.mxu0
    %1174 = vdwg.mxu0
    %v1176 = vsel %vm583, %v978, 0
    %v1179 = vsel %vm987, %v245, 0
    %1181 = vmatpush.bf16.msra.mxu0 0
    %1182 = vmatpush.bf16.msra.mxu0 0
    %1183 = vmatpush.bf16.msra.mxu0 0
    %1184 = vmatpush.bf16.msra.mxu0 0
    %1185 = vmatpush.bf16.msra.mxu0 0
    %1186 = vmatpush.bf16.msra.mxu0 0
    %1187 = vmatpush.bf16.msra.mxu0 0
    %1188 = vmatpush.bf16.msra.mxu0 %v1179
    %1189 = vmatmul.bf16.gmra.mxu0 %v1176
    %v1190 = vpop.f32.mrf.mxu0
    %v1191 = vadd.f32 0.0, %v1190
    %v1192 = vpop.f32.mrf.mxu0
    %1193 = vdwg.mxu0
    %v1195 = vsel %vm583, %v979, 0
    %v1198 = vsel %vm987, %v247, 0
    %1200 = vmatpush.bf16.msra.mxu0 0
    %1201 = vmatpush.bf16.msra.mxu0 0
    %1202 = vmatpush.bf16.msra.mxu0 0
    %1203 = vmatpush.bf16.msra.mxu0 0
    %1204 = vmatpush.bf16.msra.mxu0 0
    %1205 = vmatpush.bf16.msra.mxu0 0
    %1206 = vmatpush.bf16.msra.mxu0 0
    %1207 = vmatpush.bf16.msra.mxu0 %v1198
    %1208 = vmatmul.bf16.gmra.mxu0 %v1195
    %v1209 = vpop.f32.mrf.mxu0
    %v1210 = vadd.f32 0.0, %v1209
    %v1211 = vpop.f32.mrf.mxu0
    %1212 = vdwg.mxu0
    %v1214 = vsel %vm583, %v980, 0
    %v1217 = vsel %vm987, %v249, 0
    %1219 = vmatpush.bf16.msra.mxu0 0
    %1220 = vmatpush.bf16.msra.mxu0 0
    %1221 = vmatpush.bf16.msra.mxu0 0
    %1222 = vmatpush.bf16.msra.mxu0 0
    %1223 = vmatpush.bf16.msra.mxu0 0
    %1224 = vmatpush.bf16.msra.mxu0 0
    %1225 = vmatpush.bf16.msra.mxu0 0
    %1226 = vmatpush.bf16.msra.mxu0 %v1217
    %1227 = vmatmul.bf16.gmra.mxu0 %v1214
    %v1228 = vpop.f32.mrf.mxu0
    %v1229 = vadd.f32 0.0, %v1228
    %v1230 = vpop.f32.mrf.mxu0
    %1231 = vdwg.mxu0
    %v1233 = vsel %vm583, %v981, 0
    %v1236 = vsel %vm987, %v251, 0
    %1238 = vmatpush.bf16.msra.mxu0 0
    %1239 = vmatpush.bf16.msra.mxu0 0
    %1240 = vmatpush.bf16.msra.mxu0 0
    %1241 = vmatpush.bf16.msra.mxu0 0
    %1242 = vmatpush.bf16.msra.mxu0 0
    %1243 = vmatpush.bf16.msra.mxu0 0
    %1244 = vmatpush.bf16.msra.mxu0 0
    %1245 = vmatpush.bf16.msra.mxu0 %v1236
    %1246 = vmatmul.bf16.gmra.mxu0 %v1233
    %v1247 = vpop.f32.mrf.mxu0
    %v1248 = vadd.f32 0.0, %v1247
    %v1249 = vpop.f32.mrf.mxu0
    %1250 = vdwg.mxu0
    %v1252 = vsel %vm583, %v982, 0
    %v1255 = vsel %vm987, %v253, 0
    %1257 = vmatpush.bf16.msra.mxu0 0
    %1258 = vmatpush.bf16.msra.mxu0 0
    %1259 = vmatpush.bf16.msra.mxu0 0
    %1260 = vmatpush.bf16.msra.mxu0 0
    %1261 = vmatpush.bf16.msra.mxu0 0
    %1262 = vmatpush.bf16.msra.mxu0 0
    %1263 = vmatpush.bf16.msra.mxu0 0
    %1264 = vmatpush.bf16.msra.mxu0 %v1255
    %1265 = vmatmul.bf16.gmra.mxu0 %v1252
    %v1266 = vpop.f32.mrf.mxu0
    %v1267 = vadd.f32 0.0, %v1266
    %v1268 = vpop.f32.mrf.mxu0
    %1269 = vdwg.mxu0
    %v1271 = vsel %vm583, %v983, 0
    %v1274 = vsel %vm987, %v255, 0
    %1276 = vmatpush.bf16.msra.mxu0 0
    %1277 = vmatpush.bf16.msra.mxu0 0
    %1278 = vmatpush.bf16.msra.mxu0 0
    %1279 = vmatpush.bf16.msra.mxu0 0
    %1280 = vmatpush.bf16.msra.mxu0 0
    %1281 = vmatpush.bf16.msra.mxu0 0
    %1282 = vmatpush.bf16.msra.mxu0 0
    %1283 = vmatpush.bf16.msra.mxu0 %v1274
    %1284 = vmatmul.bf16.gmra.mxu0 %v1271
    %v1285 = vpop.f32.mrf.mxu0
    %v1286 = vadd.f32 0.0, %v1285
    %v1287 = vpop.f32.mrf.mxu0
    %1288 = vdwg.mxu0
    %1293 = vrot.lane.b32.xlu0 %v1077, 32
    %v1294 = vpop.permute.xlu0 %1293
    %1295 = vrot.lane.b32.xlu0 %v1096, 32
    %v1296 = vpop.permute.xlu0 %1295
    %1297 = vrot.lane.b32.xlu0 %v1115, 32
    %v1298 = vpop.permute.xlu0 %1297
    %1299 = vrot.lane.b32.xlu0 %v1134, 32
    %v1300 = vpop.permute.xlu0 %1299
    %1309 = vrot.lane.b32.xlu0 %v1153, 64
    %v1310 = vpop.permute.xlu0 %1309
    %1311 = vrot.lane.b32.xlu0 %v1172, 64
    %v1312 = vpop.permute.xlu0 %1311
    %1313 = vrot.lane.b32.xlu0 %v1191, 64
    %v1314 = vpop.permute.xlu0 %1313
    %1315 = vrot.lane.b32.xlu0 %v1210, 64
    %v1316 = vpop.permute.xlu0 %1315
    %1325 = vrot.lane.b32.xlu0 %v1229, 96
    %v1326 = vpop.permute.xlu0 %1325
    %1327 = vrot.lane.b32.xlu0 %v1248, 96
    %v1328 = vpop.permute.xlu0 %1327
    %1329 = vrot.lane.b32.xlu0 %v1267, 96
    %v1330 = vpop.permute.xlu0 %1329
    %1331 = vrot.lane.b32.xlu0 %v1286, 96
    %v1332 = vpop.permute.xlu0 %1331
    %v1337 = vsel %vm112, %v1001, %v1294
    %v1338 = vsel %vm112, %v1020, %v1296
    %v1339 = vsel %vm112, %v1039, %v1298
    %v1340 = vsel %vm112, %v1058, %v1300
    %vm1341 = vcmask 523264
    %v1342 = vsel %vm1341, %v1337, %v1310
    %v1343 = vsel %vm1341, %v1338, %v1312
    %v1344 = vsel %vm1341, %v1339, %v1314
    %v1345 = vsel %vm1341, %v1340, %v1316
    %vm1346 = vcmask 785408
    %v1347 = vsel %vm1346, %v1342, %v1326
    %v1348 = vsel %vm1346, %v1343, %v1328
    %v1349 = vsel %vm1346, %v1344, %v1330
    %v1350 = vsel %vm1346, %v1345, %v1332
    %v1351 = vpack.c.bf16 %v1348, %v1347
    %v1352 = vpack.c.bf16 %v1350, %v1349
    %v1353 = vld [vmem:[%s2] sm:$0xf]
    %v1354 = vld [vmem:[%s2 + $0x4] sm:$0xf]
    %v1355 = vld [vmem:[%s2 + $0x8] sm:$0xf]
    %v1356 = vld [vmem:[%s2 + $0xc] sm:$0xf]
    %v1357 = vld [vmem:[%s2 + $0x10] sm:$0xf]
    %v1358 = vld [vmem:[%s2 + $0x14] sm:$0xf]
    %v1359 = vld [vmem:[%s2 + $0x18] sm:$0xf]
    %v1360 = vld [vmem:[%s2 + $0x1c] sm:$0xf]
    %v1361 = vld [vmem:[%s2 + $0x20] sm:$0xf]
    %v1362 = vld [vmem:[%s2 + $0x24] sm:$0xf]
    %v1363 = vld [vmem:[%s2 + $0x28] sm:$0xf]
    %v1364 = vld [vmem:[%s2 + $0x2c] sm:$0xf]
    %v1365 = vld [vmem:[%s2 + $0x30] sm:$0xf]
    %v1366 = vld [vmem:[%s2 + $0x34] sm:$0xf]
    %v1367 = vld [vmem:[%s2 + $0x38] sm:$0xf]
    %v1368 = vld [vmem:[%s2 + $0x3c] sm:$0xf]
    %v1385 = vunpack.c.l.b16 %v1353
    %v1386 = vunpack.c.l.b16 %v1354
    %v1387 = vunpack.c.l.b16 %v1355
    %v1388 = vunpack.c.l.b16 %v1356
    %v1389 = vunpack.c.l.b16 %v1357
    %v1390 = vunpack.c.l.b16 %v1358
    %v1391 = vunpack.c.l.b16 %v1359
    %v1392 = vunpack.c.l.b16 %v1360
    %v1393 = vunpack.c.l.b16 %v1361
    %v1394 = vunpack.c.l.b16 %v1362
    %v1395 = vunpack.c.l.b16 %v1363
    %v1396 = vunpack.c.l.b16 %v1364
    %v1397 = vunpack.c.l.b16 %v1365
    %v1398 = vunpack.c.l.b16 %v1366
    %v1399 = vunpack.c.l.b16 %v1367
    %v1400 = vunpack.c.l.b16 %v1368
    %v1401 = vpack.c.b16 %v1386, %v1385
    %v1402 = vpack.c.b16 %v1388, %v1387
    %v1403 = vpack.c.b16 %v1390, %v1389
    %v1404 = vpack.c.b16 %v1392, %v1391
    %v1405 = vpack.c.b16 %v1394, %v1393
    %v1406 = vpack.c.b16 %v1396, %v1395
    %v1407 = vpack.c.b16 %v1398, %v1397
    %v1408 = vpack.c.b16 %v1400, %v1399
    %1417 = vmatpush.bf16.msra.mxu0 %v1408
    %1418 = vmatpush.bf16.msra.mxu0 %v1407
    %1419 = vmatpush.bf16.msra.mxu0 %v1406
    %1420 = vmatpush.bf16.msra.mxu0 %v1405
    %1421 = vmatpush.bf16.msra.mxu0 %v1404
    %1422 = vmatpush.bf16.msra.mxu0 %v1403
    %1423 = vmatpush.bf16.msra.mxu0 %v1402
    %1424 = vmatpush.bf16.msra.mxu0 %v1401
    %1425 = vmatmul.bf16.gmra.mxu0 %v1351
    %v1426 = vpop.f32.mrf.mxu0
    %v1427 = vadd.f32 0.0, %v1426
    %v1428 = vpop.f32.mrf.mxu0
    %v1429 = vadd.f32 0.0, %v1428
    %1430 = vmatmul.bf16.gmra.mxu0 %v1352
    %v1431 = vpop.f32.mrf.mxu0
    %v1432 = vadd.f32 0.0, %v1431
    %v1433 = vpop.f32.mrf.mxu0
    %v1434 = vadd.f32 0.0, %v1433
    %1435 = vdwg.mxu0
    %v1436 = vld [vmem:[%s7] sm:$0x1]
    %v1437 = vld [vmem:[%s8] sm:$0x1]
    %v1438 = vadd.f32 %v66, %v1427
    %v1439 = vadd.f32 %v67, %v1429
    %v1440 = vadd.f32 %v68, %v1432
    %v1441 = vadd.f32 %v69, %v1434
    %v1442 = vsel %vm112, %v1438, 0.0
    %1443 = vadd.xlane.f32.xlu0 %v1442
    %v1444 = vpop.xlane.xlu0 %1443
    %v1445 = vsel %vm112, %v1439, 0.0
    %1446 = vadd.xlane.f32.xlu0 %v1445
    %v1447 = vpop.xlane.xlu0 %1446
    %v1448 = vsel %vm112, %v1440, 0.0
    %1449 = vadd.xlane.f32.xlu0 %v1448
    %v1450 = vpop.xlane.xlu0 %1449
    %v1451 = vsel %vm112, %v1441, 0.0
    %1452 = vadd.xlane.f32.xlu0 %v1451
    %v1453 = vpop.xlane.xlu0 %1452
    %v1454 = vrcp.pop 32.0
    %v1455 = vmul.f32 32.0, %v1454
    %v1456 = vsub.f32 1.0, %v1455
    %v1457 = vmul.f32 %v1454, %v1456
    %v1458 = vadd.f32 %v1454, %v1457
    %vm1459 = vweird.f32 %v1454
    %v1460 = vsel %vm1459, %v1454, %v1458
    %v1461 = vmul.f32 %v1444, %v1460
    %v1462 = vmul.f32 %v1447, %v1460
    %v1463 = vmul.f32 %v1450, %v1460
    %v1464 = vmul.f32 %v1453, %v1460
    %v1465 = vsub.f32 %v1438, %v1461
    %v1466 = vsub.f32 %v1439, %v1462
    %v1467 = vsub.f32 %v1440, %v1463
    %v1468 = vsub.f32 %v1441, %v1464
    %v1469 = vmul.f32 %v1465, %v1465
    %v1470 = vmul.f32 %v1466, %v1466
    %v1471 = vmul.f32 %v1467, %v1467
    %v1472 = vmul.f32 %v1468, %v1468
    %v1473 = vsel %vm112, %v1469, 0.0
    %1474 = vadd.xlane.f32.xlu0 %v1473
    %v1475 = vpop.xlane.xlu0 %1474
    %v1476 = vsel %vm112, %v1470, 0.0
    %1477 = vadd.xlane.f32.xlu0 %v1476
    %v1478 = vpop.xlane.xlu0 %1477
    %v1479 = vsel %vm112, %v1471, 0.0
    %1480 = vadd.xlane.f32.xlu0 %v1479
    %v1481 = vpop.xlane.xlu0 %1480
    %v1482 = vsel %vm112, %v1472, 0.0
    %1483 = vadd.xlane.f32.xlu0 %v1482
    %v1484 = vpop.xlane.xlu0 %1483
    %v1485 = vmul.f32 %v1475, %v1460
    %v1486 = vmul.f32 %v1478, %v1460
    %v1487 = vmul.f32 %v1481, %v1460
    %v1488 = vmul.f32 %v1484, %v1460
    %v1489 = vadd.f32 %v1485, 1e-05
    %v1490 = vadd.f32 %v1486, 1e-05
    %v1491 = vadd.f32 %v1487, 1e-05
    %v1492 = vadd.f32 %v1488, 1e-05
    %v1493 = vrsqrt.pop %v1489
    %v1494 = vmul.f32 %v1493, %v1489
    %v1495 = vmul.f32 %v1494, %v1493
    %v1496 = vmul.f32 0.5, %v1495
    %v1497 = vsub.f32 1.5, %v1496
    %v1498 = vmul.f32 %v1493, %v1497
    %vm1499 = vweird.f32 %v1489
    %vm1500 = vweird.f32 %v1493
    %vm1501 = vmor %vm1499, %vm1500
    %v1502 = vsel %vm1501, %v1493, %v1498
    %v1503 = vrsqrt.pop %v1490
    %v1504 = vmul.f32 %v1503, %v1490
    %v1505 = vmul.f32 %v1504, %v1503
    %v1506 = vmul.f32 0.5, %v1505
    %v1507 = vsub.f32 1.5, %v1506
    %v1508 = vmul.f32 %v1503, %v1507
    %vm1509 = vweird.f32 %v1490
    %vm1510 = vweird.f32 %v1503
    %vm1511 = vmor %vm1509, %vm1510
    %v1512 = vsel %vm1511, %v1503, %v1508
    %v1513 = vrsqrt.pop %v1491
    %v1514 = vmul.f32 %v1513, %v1491
    %v1515 = vmul.f32 %v1514, %v1513
    %v1516 = vmul.f32 0.5, %v1515
    %v1517 = vsub.f32 1.5, %v1516
    %v1518 = vmul.f32 %v1513, %v1517
    %vm1519 = vweird.f32 %v1491
    %vm1520 = vweird.f32 %v1513
    %vm1521 = vmor %vm1519, %vm1520
    %v1522 = vsel %vm1521, %v1513, %v1518
    %v1523 = vrsqrt.pop %v1492
    %v1524 = vmul.f32 %v1523, %v1492
    %v1525 = vmul.f32 %v1524, %v1523
    %v1526 = vmul.f32 0.5, %v1525
    %v1527 = vsub.f32 1.5, %v1526
    %v1528 = vmul.f32 %v1523, %v1527
    %vm1529 = vweird.f32 %v1492
    %vm1530 = vweird.f32 %v1523
    %vm1531 = vmor %vm1529, %vm1530
    %v1532 = vsel %vm1531, %v1523, %v1528
    %v1533 = vmul.f32 %v1465, %v1502
    %v1534 = vmul.f32 %v1466, %v1512
    %v1535 = vmul.f32 %v1467, %v1522
    %v1536 = vmul.f32 %v1468, %v1532
    %v1538 = vperm.slane %v1436, 0
    %v1540 = vmul.f32 %v1533, %v1538
    %v1541 = vmul.f32 %v1534, %v1538
    %v1542 = vmul.f32 %v1535, %v1538
    %v1543 = vmul.f32 %v1536, %v1538
    %v1545 = vperm.slane %v1437, 0
    %v1547 = vadd.f32 %v1540, %v1545
    %v1548 = vadd.f32 %v1541, %v1545
    %v1549 = vadd.f32 %v1542, %v1545
    %v1550 = vadd.f32 %v1543, %v1545
    %v1551 = vpack.c.bf16 %v1548, %v1547
    %v1552 = vpack.c.bf16 %v1550, %v1549
    %v1553 = vld [vmem:[#allocation2] sm:$0xf]
    %v1554 = vld [vmem:[#allocation2 + $0x4] sm:$0xf]
    %v1555 = vld [vmem:[#allocation2 + $0x8] sm:$0xf]
    %v1556 = vld [vmem:[#allocation2 + $0xc] sm:$0xf]
    %v1557 = vld [vmem:[%s4] sm:$0x1]
    %v1559 = vperm.slane %v1557, 0
    %v1565 = vunpack.c.l.b16 %v1553
    %v1566 = vunpack.c.l.b16 %v1554
    %v1567 = vunpack.c.l.b16 %v1555
    %v1568 = vunpack.c.l.b16 %v1556
    %v1569 = vpack.c.b16 %v1566, %v1565
    %v1570 = vpack.c.b16 %v1568, %v1567
    %v1574 = vsel %vm112, %v1551, 0
    %v1577 = vsel %vm112, %v1552, 0
    %1579 = vmatpush.bf16.msra.mxu0 0
    %1580 = vmatpush.bf16.msra.mxu0 0
    %1581 = vmatpush.bf16.msra.mxu0 0
    %1582 = vmatpush.bf16.msra.mxu0 0
    %1583 = vmatpush.bf16.msra.mxu0 0
    %1584 = vmatpush.bf16.msra.mxu0 0
    %1585 = vmatpush.bf16.msra.mxu0 %v1570
    %1586 = vmatpush.bf16.msra.mxu0 %v1569
    %1587 = vmatmul.bf16.gmra.mxu0 %v1574
    %v1588 = vpop.f32.mrf.mxu0
    %v1589 = vadd.f32 %v1559, %v1588
    %v1590 = vpop.f32.mrf.mxu0
    %v1591 = vadd.f32 %v1559, %v1590
    %1592 = vmatmul.bf16.gmra.mxu0 %v1577
    %v1593 = vpop.f32.mrf.mxu0
    %v1594 = vadd.f32 %v1559, %v1593
    %v1595 = vpop.f32.mrf.mxu0
    %v1596 = vadd.f32 %v1559, %v1595
    %1597 = vdwg.mxu0
    %v1598 = vmax.f32 %v1589, 0.0
    %v1599 = vmax.f32 %v1591, 0.0
    %v1600 = vmax.f32 %v1594, 0.0
    %v1601 = vmax.f32 %v1596, 0.0
    %v1602 = vpack.c.bf16 %v1599, %v1598
    %v1603 = vpack.c.bf16 %v1601, %v1600
    %v1604 = vld [vmem:[#allocation5] sm:$0xf]
    %v1605 = vld [vmem:[#allocation5 + $0x4] sm:$0xf]
    %v1606 = vld [vmem:[#allocation5 + $0x8] sm:$0xf]
    %v1607 = vld [vmem:[#allocation5 + $0xc] sm:$0xf]
    %v1608 = vld [vmem:[%s6] sm:$0x1]
    %v1610 = vperm.slane %v1608, 0
    %v1616 = vunpack.c.l.b16 %v1604
    %v1617 = vunpack.c.l.b16 %v1605
    %v1618 = vunpack.c.l.b16 %v1606
    %v1619 = vunpack.c.l.b16 %v1607
    %v1620 = vpack.c.b16 %v1617, %v1616
    %v1621 = vpack.c.b16 %v1619, %v1618
    %v1625 = vsel %vm112, %v1602, 0
    %v1628 = vsel %vm112, %v1603, 0
    %1630 = vmatpush.bf16.msra.mxu0 0
    %1631 = vmatpush.bf16.msra.mxu0 0
    %1632 = vmatpush.bf16.msra.mxu0 0
    %1633 = vmatpush.bf16.msra.mxu0 0
    %1634 = vmatpush.bf16.msra.mxu0 0
    %1635 = vmatpush.bf16.msra.mxu0 0
    %1636 = vmatpush.bf16.msra.mxu0 %v1621
    %1637 = vmatpush.bf16.msra.mxu0 %v1620
    %1638 = vmatmul.bf16.gmra.mxu0 %v1625
    %v1639 = vpop.f32.mrf.mxu0
    %v1640 = vadd.f32 %v1610, %v1639
    %v1641 = vpop.f32.mrf.mxu0
    %v1642 = vadd.f32 %v1610, %v1641
    %1643 = vmatmul.bf16.gmra.mxu0 %v1628
    %v1644 = vpop.f32.mrf.mxu0
    %v1645 = vadd.f32 %v1610, %v1644
    %v1646 = vpop.f32.mrf.mxu0
    %v1647 = vadd.f32 %v1610, %v1646
    %1648 = vdwg.mxu0
    %v1649 = vadd.f32 %v1640, %v1547
    %v1650 = vadd.f32 %v1642, %v1548
    %v1651 = vadd.f32 %v1645, %v1549
    %v1652 = vadd.f32 %v1647, %v1550
    %v1653 = vsel %vm112, %v1649, 0.0
    %1654 = vadd.xlane.f32.xlu0 %v1653
    %v1655 = vpop.xlane.xlu0 %1654
    %v1656 = vsel %vm112, %v1650, 0.0
    %1657 = vadd.xlane.f32.xlu0 %v1656
    %v1658 = vpop.xlane.xlu0 %1657
    %v1659 = vsel %vm112, %v1651, 0.0
    %1660 = vadd.xlane.f32.xlu0 %v1659
    %v1661 = vpop.xlane.xlu0 %1660
    %v1662 = vsel %vm112, %v1652, 0.0
    %1663 = vadd.xlane.f32.xlu0 %v1662
    %v1664 = vpop.xlane.xlu0 %1663
    %v1665 = vmul.f32 %v1655, %v1460
    %v1666 = vmul.f32 %v1658, %v1460
    %v1667 = vmul.f32 %v1661, %v1460
    %v1668 = vmul.f32 %v1664, %v1460
    %v1669 = vsub.f32 %v1649, %v1665
    %v1670 = vsub.f32 %v1650, %v1666
    %v1671 = vsub.f32 %v1651, %v1667
    %v1672 = vsub.f32 %v1652, %v1668
    %v1673 = vmul.f32 %v1669, %v1669
    %v1674 = vmul.f32 %v1670, %v1670
    %v1675 = vmul.f32 %v1671, %v1671
    %v1676 = vmul.f32 %v1672, %v1672
    %v1677 = vsel %vm112, %v1673, 0.0
    %1678 = vadd.xlane.f32.xlu0 %v1677
    %v1679 = vpop.xlane.xlu0 %1678
    %v1680 = vsel %vm112, %v1674, 0.0
    %1681 = vadd.xlane.f32.xlu0 %v1680
    %v1682 = vpop.xlane.xlu0 %1681
    %v1683 = vsel %vm112, %v1675, 0.0
    %1684 = vadd.xlane.f32.xlu0 %v1683
    %v1685 = vpop.xlane.xlu0 %1684
    %v1686 = vsel %vm112, %v1676, 0.0
    %1687 = vadd.xlane.f32.xlu0 %v1686
    %v1688 = vpop.xlane.xlu0 %1687
    %v1689 = vmul.f32 %v1679, %v1460
    %v1690 = vmul.f32 %v1682, %v1460
    %v1691 = vmul.f32 %v1685, %v1460
    %v1692 = vmul.f32 %v1688, %v1460
    %v1693 = vadd.f32 %v1689, 1e-05
    %v1694 = vadd.f32 %v1690, 1e-05
    %v1695 = vadd.f32 %v1691, 1e-05
    %v1696 = vadd.f32 %v1692, 1e-05
    %v1697 = vrsqrt.pop %v1693
    %v1698 = vmul.f32 %v1697, %v1693
    %v1699 = vmul.f32 %v1698, %v1697
    %v1700 = vmul.f32 0.5, %v1699
    %v1701 = vsub.f32 1.5, %v1700
    %v1702 = vmul.f32 %v1697, %v1701
    %vm1703 = vweird.f32 %v1693
    %vm1704 = vweird.f32 %v1697
    %vm1705 = vmor %vm1703, %vm1704
    %v1706 = vsel %vm1705, %v1697, %v1702
    %v1707 = vrsqrt.pop %v1694
    %v1708 = vmul.f32 %v1707, %v1694
    %v1709 = vmul.f32 %v1708, %v1707
    %v1710 = vmul.f32 0.5, %v1709
    %v1711 = vsub.f32 1.5, %v1710
    %v1712 = vmul.f32 %v1707, %v1711
    %vm1713 = vweird.f32 %v1694
    %vm1714 = vweird.f32 %v1707
    %vm1715 = vmor %vm1713, %vm1714
    %v1716 = vsel %vm1715, %v1707, %v1712
    %v1717 = vrsqrt.pop %v1695
    %v1718 = vmul.f32 %v1717, %v1695
    %v1719 = vmul.f32 %v1718, %v1717
    %v1720 = vmul.f32 0.5, %v1719
    %v1721 = vsub.f32 1.5, %v1720
    %v1722 = vmul.f32 %v1717, %v1721
    %vm1723 = vweird.f32 %v1695
    %vm1724 = vweird.f32 %v1717
    %vm1725 = vmor %vm1723, %vm1724
    %v1726 = vsel %vm1725, %v1717, %v1722
    %v1727 = vrsqrt.pop %v1696
    %v1728 = vmul.f32 %v1727, %v1696
    %v1729 = vmul.f32 %v1728, %v1727
    %v1730 = vmul.f32 0.5, %v1729
    %v1731 = vsub.f32 1.5, %v1730
    %v1732 = vmul.f32 %v1727, %v1731
    %vm1733 = vweird.f32 %v1696
    %vm1734 = vweird.f32 %v1727
    %vm1735 = vmor %vm1733, %vm1734
    %v1736 = vsel %vm1735, %v1727, %v1732
    %v1737 = vmul.f32 %v1669, %v1706
    %v1738 = vmul.f32 %v1670, %v1716
    %v1739 = vmul.f32 %v1671, %v1726
    %v1740 = vmul.f32 %v1672, %v1736
    %v1741 = vmul.f32 %v1737, %v1538
    %v1742 = vmul.f32 %v1738, %v1538
    %v1743 = vmul.f32 %v1739, %v1538
    %v1744 = vmul.f32 %v1740, %v1538
    %v1745 = vadd.f32 %v1741, %v1545
    %v1746 = vadd.f32 %v1742, %v1545
    %v1747 = vadd.f32 %v1743, %v1545
    %v1748 = vadd.f32 %v1744, %v1545
    %1749 = vst.msk [vmem:[#allocation7] sm:$0xff] %vm112, %v1745
    %1750 = vst.msk [vmem:[#allocation7 + $0x8] sm:$0xff] %vm112, %v1746
    %1751 = vst.msk [vmem:[#allocation7 + $0x10] sm:$0xff] %vm112, %v1747
    %1752 = vst.msk [vmem:[#allocation7 + $0x18] sm:$0xff] %vm112, %v1748
    // Predicated region
    $region46: #{trm_encoder_forward.1} parent=1 // pred_check
      _
    $region47: #{trm_encoder_forward.1} parent=1 // pred_check_branch
      %1754 = sbr.rel (0) target = $region49
    $region48: #{trm_encoder_forward.1} parent=1 // pred_region
      %1756 = vsyncadd [#allocation4], 0
      %s1757 = sshll.u32 [#allocation7], 4
      %s1758 = int_to_ptr.vmem [resolvable:$true] %s1757
      %s1759 = sshll.u32 %s9, 4
      %s1760 = int_to_ptr.hbm [resolvable:$true] %s1759
      %1765 = dma.vmem_to_hbm [thread:$0]  %s1758, 512, %s1760, [#allocation4], 128, 128, 8
    $region49: #{trm_encoder_forward.1} parent=1 // pred_fallthru
      _
    // Predicated region
    $region50: #{trm_encoder_forward.1} parent=1 // pred_check
      _
    $region51: #{trm_encoder_forward.1} parent=1 // pred_check_branch
      %1767 = sbr.rel (0) target = $region53
    $region52: #{trm_encoder_forward.1} parent=1 // pred_region
      %1769 = dma.done [#allocation4], 512
    $region53: #{trm_encoder_forward.1} parent=1 // pred_fallthru
      _
    %1770 = vsyncpa [#allocation3], 1
    %1771 = vsyncpa [#allocation6], 1
    %1772 = vsyncpa [#allocation4], 1

</llo_original>
